<compile_context>
chip_gen: v6e
topology: v6e:2x2x1
jax: 0.10.0
libtpu: 0.0.40
codegen_flags: <defaults>
</compile_context>

<pallas_src>
import functools

import jax
import jax.numpy as jnp
from jax.experimental import pallas as pl
from jax.experimental.pallas import tpu as pltpu


# ----------------------------------------------------------------------------
# Fused kernel: L LSTM layers (time loop inside) + FC projection.
# ----------------------------------------------------------------------------
def _char_rnn_kernel(n_layers, matmul_dtype, x_ref, h0_ref, c0_ref, *refs):
    """refs layout:
      refs[0 : 3L]            per-layer (w_ih^T, w_hh^T, bias) VMEM refs
      refs[3L], refs[3L+1]    fc weight^T, fc bias
      refs[3L+2 : 3L+5]       outputs: logits (T,B,C), h_n (L,B,H), c_n (L,B,H)
      refs[3L+5 :]            scratch: gx (T,B,4H), h_all (T,B,H)
    """
    layer_refs = refs[:3 * n_layers]
    wfc_ref = refs[3 * n_layers]
    bfc_ref = refs[3 * n_layers + 1]
    out_ref, hN_ref, cN_ref = refs[3 * n_layers + 2:3 * n_layers + 5]
    gx_sc, h_all_sc = refs[3 * n_layers + 5:]

    T, B, _ = x_ref.shape
    H = h_all_sc.shape[-1]

    def run_layer(l, in_flat):
        """in_flat: (T*B, in_dim) time-major-flattened layer input (f32)."""
        wih_ref, whh_ref, b_ref = layer_refs[3 * l:3 * l + 3]

        # Hoisted input projection for all time steps at once (one big matmul).
        gx = jnp.dot(in_flat.astype(matmul_dtype),
                     wih_ref[...].astype(matmul_dtype),
                     preferred_element_type=jnp.float32) + b_ref[...]
        gx_sc[...] = gx.reshape(T, B, 4 * H)

        whh = whh_ref[...].astype(matmul_dtype)

        def step(t, carry):
            h, c = carry
            gates = gx_sc[t] + jnp.dot(h.astype(matmul_dtype), whh,
                                       preferred_element_type=jnp.float32)
            # Gate slices are lane-aligned whenever H is a multiple of 128.
            i_g = jax.nn.sigmoid(gates[:, 0:H])
            f_g = jax.nn.sigmoid(gates[:, H:2 * H])
            g_g = jnp.tanh(gates[:, 2 * H:3 * H])
            o_g = jax.nn.sigmoid(gates[:, 3 * H:4 * H])
            c_new = f_g * c + i_g * g_g
            h_new = o_g * jnp.tanh(c_new)
            h_all_sc[t] = h_new
            return h_new, c_new

        hT, cT = jax.lax.fori_loop(
            0, T, step,
            (h0_ref[l].astype(jnp.float32), c0_ref[l].astype(jnp.float32)))
        hN_ref[l] = hT.astype(hN_ref.dtype)
        cN_ref[l] = cT.astype(cN_ref.dtype)

    # Layer 0: input is the (time-major) one-hot sequence.
    # TODO(synk): layer-0 x is one-hot, so x @ W_ih^T could be a row gather of
    # W_ih^T by token id; kept as a matmul to preserve the (B,T,n_chars) input.
    in_dim0 = x_ref.shape[-1]
    run_layer(0, x_ref[...].reshape(T * B, in_dim0).astype(jnp.float32))

    # Remaining layers consume the previous layer's hidden states (still VMEM).
    for l in range(1, n_layers):
        # TODO(synk): nn.LSTM inter-layer dropout is identity here (inference).
        run_layer(l, h_all_sc[...].reshape(T * B, H))

    # TODO(synk): self.dropout is identity here (inference mode).
    # FC head on the last layer's hidden states, fused in the same kernel.
    logits = jnp.dot(h_all_sc[...].reshape(T * B, H).astype(matmul_dtype),
                     wfc_ref[...].astype(matmul_dtype),
                     preferred_element_type=jnp.float32) + bfc_ref[...]
    C = out_ref.shape[-1]
    out_ref[...] = logits.reshape(T, B, C).astype(out_ref.dtype)


# ----------------------------------------------------------------------------
# Wrapper: matches CharRNN.forward semantics (eval mode).
# ----------------------------------------------------------------------------
def char_rnn_forward(params, x, hidden, *, matmul_dtype=jnp.float32):
    """
    x      : (B, T, n_chars) batch-first one-hot, like PyTorch
    hidden : (h, c) each (n_layers, B, n_hidden)
    returns: out (B*T, n_chars), (h_n, c_n)
    """
    h_in, c_in = hidden
    n_layers, B, H = h_in.shape
    T, I = x.shape[1], x.shape[2]
    C = params["fc"]["w"].shape[0]

    # Single relayout to time-major; everything else stays inside one kernel.
    x_tm = jnp.transpose(x, (1, 0, 2)).astype(jnp.float32)      # (T, B, I)

    args = [x_tm, h_in.astype(jnp.float32), c_in.astype(jnp.float32)]
    in_specs = [
        pl.BlockSpec((T, B, I), lambda i: (0, 0, 0)),
        pl.BlockSpec((n_layers, B, H), lambda i: (0, 0, 0)),
        pl.BlockSpec((n_layers, B, H), lambda i: (0, 0, 0)),
    ]
    for l in range(n_layers):
        p = params["lstm"][l]
        in_dim = I if l == 0 else H
        wih_t = jnp.asarray(p["w_ih"], jnp.float32).T            # (in_dim, 4H)
        whh_t = jnp.asarray(p["w_hh"], jnp.float32).T            # (H, 4H)
        b = (jnp.asarray(p["b_ih"], jnp.float32)
             + jnp.asarray(p["b_hh"], jnp.float32))[None, :]     # (1, 4H)
        args += [wih_t, whh_t, b]
        in_specs += [
            pl.BlockSpec((in_dim, 4 * H), lambda i: (0, 0)),
            pl.BlockSpec((H, 4 * H), lambda i: (0, 0)),
            pl.BlockSpec((1, 4 * H), lambda i: (0, 0)),
        ]
    wfc_t = jnp.asarray(params["fc"]["w"], jnp.float32).T        # (H, C)
    bfc = jnp.asarray(params["fc"]["b"], jnp.float32)[None, :]   # (1, C)
    args += [wfc_t, bfc]
    in_specs += [
        pl.BlockSpec((H, C), lambda i: (0, 0)),
        pl.BlockSpec((1, C), lambda i: (0, 0)),
    ]

    out_tm, h_n, c_n = pl.pallas_call(
        functools.partial(_char_rnn_kernel, n_layers, matmul_dtype),
        out_shape=(
            jax.ShapeDtypeStruct((T, B, C), jnp.float32),
            jax.ShapeDtypeStruct((n_layers, B, H), jnp.float32),
            jax.ShapeDtypeStruct((n_layers, B, H), jnp.float32),
        ),
        grid=(1,),
        in_specs=in_specs,
        out_specs=(
            pl.BlockSpec((T, B, C), lambda i: (0, 0, 0)),
            pl.BlockSpec((n_layers, B, H), lambda i: (0, 0, 0)),
            pl.BlockSpec((n_layers, B, H), lambda i: (0, 0, 0)),
        ),
        scratch_shapes=[
            # TODO(synk): for long sequences / big batches (esp. v7x's 64 MiB
            # VMEM) tile the time axis instead of holding the whole (T,B,4H)
            # gate precompute resident in VMEM.
            pltpu.VMEM((T, B, 4 * H), jnp.float32),
            pltpu.VMEM((T, B, H), jnp.float32),
        ],
        compiler_params=pltpu.CompilerParams(
            dimension_semantics=("arbitrary",)),
    )(*args)

    # PyTorch: r_output.contiguous().view(-1, n_hidden) → batch-major rows.
    out = jnp.transpose(out_tm, (1, 0, 2)).reshape(B * T, C)
    return out, (h_n, c_n)


# ----------------------------------------------------------------------------
# Pure-JAX reference (nn.LSTM / nn.Linear semantics) for a correctness check.
# ----------------------------------------------------------------------------
def _ref_forward(params, x, hidden):
    hp = jax.lax.Precision.HIGHEST
    h_in, c_in = hidden
    n_layers = h_in.shape[0]
    B, T, _ = x.shape
    layer_in = jnp.transpose(x, (1, 0, 2)).astype(jnp.float32)   # (T, B, I)
    h_out, c_out = [], []
    for l in range(n_layers):
        p = params["lstm"][l]
        wih_t, whh_t = p["w_ih"].T, p["w_hh"].T
        b = p["b_ih"] + p["b_hh"]
        H = whh_t.shape[0]

        def step(carry, x_t, wih_t=wih_t, whh_t=whh_t, b=b, H=H):
            h, c = carry
            g = (jnp.dot(x_t, wih_t, precision=hp)
                 + jnp.dot(h, whh_t, precision=hp) + b)
            i_g = jax.nn.sigmoid(g[:, 0:H])
            f_g = jax.nn.sigmoid(g[:, H:2 * H])
            g_g = jnp.tanh(g[:, 2 * H:3 * H])
            o_g = jax.nn.sigmoid(g[:, 3 * H:4 * H])
            c_new = f_g * c + i_g * g_g
            h_new = o_g * jnp.tanh(c_new)
            return (h_new, c_new), h_new

        (hT, cT), outs = jax.lax.scan(step, (h_in[l], c_in[l]), layer_in)
        h_out.append(hT)
        c_out.append(cT)
        layer_in = outs
    r_output = jnp.transpose(layer_in, (1, 0, 2))                 # (B, T, H)
    flat = r_output.reshape(B * T, r_output.shape[-1])
    out = jnp.dot(flat, params["fc"]["w"].T, precision=hp) + params["fc"]["b"]
    return out, (jnp.stack(h_out), jnp.stack(c_out))


# ----------------------------------------------------------------------------
# Deterministic parameter init (PyTorch-style uniform(-1/sqrt(H), 1/sqrt(H)))
# ----------------------------------------------------------------------------
def init_params(key, n_chars, n_hidden, n_layers):
    params = {"lstm": [], "fc": {}}
    bound = 1.0 / jnp.sqrt(jnp.float32(n_hidden))
    for l in range(n_layers):
        in_dim = n_chars if l == 0 else n_hidden
        key, k1, k2, k3, k4 = jax.random.split(key, 5)
        params["lstm"].append({
            "w_ih": jax.random.uniform(k1, (4 * n_hidden, in_dim), jnp.float32, -bound, bound),
            "w_hh": jax.random.uniform(k2, (4 * n_hidden, n_hidden), jnp.float32, -bound, bound),
            "b_ih": jax.random.uniform(k3, (4 * n_hidden,), jnp.float32, -bound, bound),
            "b_hh": jax.random.uniform(k4, (4 * n_hidden,), jnp.float32, -bound, bound),
        })
    key, k1, k2 = jax.random.split(key, 3)
    params["fc"]["w"] = jax.random.uniform(k1, (n_chars, n_hidden), jnp.float32, -bound, bound)
    params["fc"]["b"] = jax.random.uniform(k2, (n_chars,), jnp.float32, -bound, bound)
    return params


if __name__ == "__main__":
    # Small, layout-friendly shapes consistent with the module's forward:
    # B=8 fills the sublane dim, H=C=128 keep gate slices / stores lane-aligned.
    n_chars = 128     # len(tokens)
    n_hidden = 128
    n_layers = 2
    B, T = 8, 16

    key = jax.random.PRNGKey(0)
    key, kp, kx = jax.random.split(key, 3)
    params = init_params(kp, n_chars, n_hidden, n_layers)

    # one-hot character input, batch-first (B, T, n_chars)
    ids = jax.random.randint(kx, (B, T), 0, n_chars)
    x = jax.nn.one_hot(ids, n_chars, dtype=jnp.float32)

    # init_hidden: zeros (n_layers, B, n_hidden)
    hidden = (jnp.zeros((n_layers, B, n_hidden), jnp.float32),
              jnp.zeros((n_layers, B, n_hidden), jnp.float32))

    fwd = jax.jit(char_rnn_forward)
    out, (h_n, c_n) = fwd(params, x, hidden)
    jax.block_until_ready((out, h_n, c_n))

    assert out.shape == (B * T, n_chars)
    assert h_n.shape == (n_layers, B, n_hidden)
    assert c_n.shape == (n_layers, B, n_hidden)

    # Numerical sanity check against a pure-JAX reference.
    ref_out, (ref_h, ref_c) = _ref_forward(params, x, hidden)
    assert jnp.allclose(out, ref_out, atol=2e-3, rtol=2e-3)
    assert jnp.allclose(h_n, ref_h, atol=2e-3, rtol=2e-3)
    assert jnp.allclose(c_n, ref_c, atol=2e-3, rtol=2e-3)

    print("KERNEL_OK")
</pallas_src>

<mosaic_0001>
module attributes {stable_mosaic.version = 11 : i64} {
  func.func @_char_rnn_kernel(%arg0: i32, %arg1: memref<16x8x128xf32, #tpu.memory_space<vmem>>, %arg2: memref<2x8x128xf32, #tpu.memory_space<vmem>>, %arg3: memref<2x8x128xf32, #tpu.memory_space<vmem>>, %arg4: memref<128x512xf32, #tpu.memory_space<vmem>>, %arg5: memref<128x512xf32, #tpu.memory_space<vmem>>, %arg6: memref<1x512xf32, #tpu.memory_space<vmem>>, %arg7: memref<128x512xf32, #tpu.memory_space<vmem>>, %arg8: memref<128x512xf32, #tpu.memory_space<vmem>>, %arg9: memref<1x512xf32, #tpu.memory_space<vmem>>, %arg10: memref<128x128xf32, #tpu.memory_space<vmem>>, %arg11: memref<1x128xf32, #tpu.memory_space<vmem>>, %arg12: memref<16x8x128xf32, #tpu.memory_space<vmem>>, %arg13: memref<2x8x128xf32, #tpu.memory_space<vmem>>, %arg14: memref<2x8x128xf32, #tpu.memory_space<vmem>>, %arg15: memref<16x8x512xf32, #tpu.memory_space<vmem>>, %arg16: memref<16x8x128xf32, #tpu.memory_space<vmem>>) attributes {dimension_semantics = [#tpu.dimension_semantics<arbitrary>], iteration_bounds = array<i64: 1>, scalar_prefetch = 0 : i64, scratch_operands = 2 : i64, tpu.core_type = #tpu.core_type<tc>, window_params = [{pipeline_mode = #tpu.pipeline_mode<synchronous>, transform_indices = @transform_0, window_bounds = array<i64: 16, 8, 128>}, {pipeline_mode = #tpu.pipeline_mode<synchronous>, transform_indices = @transform_1, window_bounds = array<i64: 2, 8, 128>}, {pipeline_mode = #tpu.pipeline_mode<synchronous>, transform_indices = @transform_2, window_bounds = array<i64: 2, 8, 128>}, {pipeline_mode = #tpu.pipeline_mode<synchronous>, transform_indices = @transform_3, window_bounds = array<i64: 128, 512>}, {pipeline_mode = #tpu.pipeline_mode<synchronous>, transform_indices = @transform_4, window_bounds = array<i64: 128, 512>}, {pipeline_mode = #tpu.pipeline_mode<synchronous>, transform_indices = @transform_5, window_bounds = array<i64: 1, 512>}, {pipeline_mode = #tpu.pipeline_mode<synchronous>, transform_indices = @transform_6, window_bounds = array<i64: 128, 512>}, {pipeline_mode = #tpu.pipeline_mode<synchronous>, transform_indices = @transform_7, window_bounds = array<i64: 128, 512>}, {pipeline_mode = #tpu.pipeline_mode<synchronous>, transform_indices = @transform_8, window_bounds = array<i64: 1, 512>}, {pipeline_mode = #tpu.pipeline_mode<synchronous>, transform_indices = @transform_9, window_bounds = array<i64: 128, 128>}, {pipeline_mode = #tpu.pipeline_mode<synchronous>, transform_indices = @transform_10, window_bounds = array<i64: 1, 128>}, {pipeline_mode = #tpu.pipeline_mode<synchronous>, transform_indices = @transform_11, window_bounds = array<i64: 16, 8, 128>}, {pipeline_mode = #tpu.pipeline_mode<synchronous>, transform_indices = @transform_12, window_bounds = array<i64: 2, 8, 128>}, {pipeline_mode = #tpu.pipeline_mode<synchronous>, transform_indices = @transform_13, window_bounds = array<i64: 2, 8, 128>}]} {
    %c0 = arith.constant 0 : index
    %c0_0 = arith.constant 0 : index
    %c0_1 = arith.constant 0 : index
    %0 = vector.load %arg1[%c0, %c0_0, %c0_1] : memref<16x8x128xf32, #tpu.memory_space<vmem>>, vector<16x8x128xf32>
    %1 = vector.shape_cast %0 : vector<16x8x128xf32> to vector<128x128xf32>
    %c0_2 = arith.constant 0 : index
    %c0_3 = arith.constant 0 : index
    %2 = vector.load %arg4[%c0_2, %c0_3] : memref<128x512xf32, #tpu.memory_space<vmem>>, vector<128x512xf32>
    %cst = arith.constant dense<0.000000e+00> : vector<128x512xf32>
    %3 = tpu.matmul %1, %2, %cst {dimension_numbers = #tpu.dot_dimension_numbers<[1], [0], [0], [1], [0, 0, 1, 1], [], []>} : vector<128x128xf32>, vector<128x512xf32>, vector<128x512xf32> -> vector<128x512xf32>
    %c0_4 = arith.constant 0 : index
    %c0_5 = arith.constant 0 : index
    %4 = vector.load %arg6[%c0_4, %c0_5] : memref<1x512xf32, #tpu.memory_space<vmem>>, vector<1x512xf32>
    %5 = vector.broadcast %4 : vector<1x512xf32> to vector<128x512xf32>
    %6 = arith.addf %3, %5 : vector<128x512xf32>
    %7 = vector.shape_cast %6 : vector<128x512xf32> to vector<16x8x512xf32>
    %c0_6 = arith.constant 0 : index
    %c0_7 = arith.constant 0 : index
    %c0_8 = arith.constant 0 : index
    %8 = vector.load %arg15[%c0_6, %c0_7, %c0_8] : memref<16x8x512xf32, #tpu.memory_space<vmem>>, vector<16x8x512xf32>
    tpu.vector_store %arg15[%c0_6, %c0_7, %c0_8], %7 {strides = array<i32>} : memref<16x8x512xf32, #tpu.memory_space<vmem>>, vector<16x8x512xf32>,
    %c0_9 = arith.constant 0 : index
    %c0_10 = arith.constant 0 : index
    %9 = vector.load %arg5[%c0_9, %c0_10] : memref<128x512xf32, #tpu.memory_space<vmem>>, vector<128x512xf32>
    %c0_11 = arith.constant 0 : index
    %c0_12 = arith.constant 0 : index
    %c0_13 = arith.constant 0 : index
    %10 = vector.load %arg2[%c0_11, %c0_12, %c0_13] : memref<2x8x128xf32, #tpu.memory_space<vmem>>, vector<1x8x128xf32>
    %11 = vector.shape_cast %10 : vector<1x8x128xf32> to vector<8x128xf32>
    %c0_14 = arith.constant 0 : index
    %c0_15 = arith.constant 0 : index
    %c0_16 = arith.constant 0 : index
    %12 = vector.load %arg3[%c0_14, %c0_15, %c0_16] : memref<2x8x128xf32, #tpu.memory_space<vmem>>, vector<1x8x128xf32>
    %13 = vector.shape_cast %12 : vector<1x8x128xf32> to vector<8x128xf32>
    %c0_i32 = arith.constant 0 : i32
    %c16_i32 = arith.constant 16 : i32
    %14 = arith.addi %c0_i32, %c16_i32 : i32
    %c1_i32 = arith.constant 1 : i32
    %15:2 = scf.for %arg17 = %c0_i32 to %14 step %c1_i32 iter_args(%arg18 = %11, %arg19 = %13) -> (vector<8x128xf32>, vector<8x128xf32>)  : i32 {
      %53 = arith.index_cast %arg17 : i32 to index
      %c0_63 = arith.constant 0 : index
      %c0_64 = arith.constant 0 : index
      %54 = vector.load %arg15[%53, %c0_63, %c0_64] : memref<16x8x512xf32, #tpu.memory_space<vmem>>, vector<1x8x512xf32>
      %55 = vector.shape_cast %54 : vector<1x8x512xf32> to vector<8x512xf32>
      %cst_65 = arith.constant dense<0.000000e+00> : vector<8x512xf32>
      %56 = tpu.matmul %arg18, %9, %cst_65 {dimension_numbers = #tpu.dot_dimension_numbers<[1], [0], [0], [1], [0, 0, 1, 1], [], []>} : vector<8x128xf32>, vector<128x512xf32>, vector<8x512xf32> -> vector<8x512xf32>
      %57 = arith.addf %55, %56 : vector<8x512xf32>
      %58 = vector.extract_strided_slice %57 {offsets = [0, 0], sizes = [8, 128], strides = [1, 1]} : vector<8x512xf32> to vector<8x128xf32>
      %59 = arith.negf %58 : vector<8x128xf32>
      %60 = math.exp %59 : vector<8x128xf32>
      %cst_66 = arith.constant 1.000000e+00 : f32
      %61 = vector.broadcast %cst_66 : f32 to vector<8x128xf32>
      %62 = arith.addf %61, %60 : vector<8x128xf32>
      %63 = arith.divf %61, %62 : vector<8x128xf32>
      %64 = vector.extract_strided_slice %57 {offsets = [0, 128], sizes = [8, 128], strides = [1, 1]} : vector<8x512xf32> to vector<8x128xf32>
      %65 = arith.negf %64 : vector<8x128xf32>
      %66 = math.exp %65 : vector<8x128xf32>
      %cst_67 = arith.constant 1.000000e+00 : f32
      %67 = vector.broadcast %cst_67 : f32 to vector<8x128xf32>
      %68 = arith.addf %67, %66 : vector<8x128xf32>
      %69 = arith.divf %67, %68 : vector<8x128xf32>
      %70 = vector.extract_strided_slice %57 {offsets = [0, 256], sizes = [8, 128], strides = [1, 1]} : vector<8x512xf32> to vector<8x128xf32>
      %71 = math.tanh %70 : vector<8x128xf32>
      %72 = vector.extract_strided_slice %57 {offsets = [0, 384], sizes = [8, 128], strides = [1, 1]} : vector<8x512xf32> to vector<8x128xf32>
      %73 = arith.negf %72 : vector<8x128xf32>
      %74 = math.exp %73 : vector<8x128xf32>
      %cst_68 = arith.constant 1.000000e+00 : f32
      %75 = vector.broadcast %cst_68 : f32 to vector<8x128xf32>
      %76 = arith.addf %75, %74 : vector<8x128xf32>
      %77 = arith.divf %75, %76 : vector<8x128xf32>
      %78 = arith.mulf %69, %arg19 : vector<8x128xf32>
      %79 = arith.mulf %63, %71 : vector<8x128xf32>
      %80 = arith.addf %78, %79 : vector<8x128xf32>
      %81 = math.tanh %80 : vector<8x128xf32>
      %82 = arith.mulf %77, %81 : vector<8x128xf32>
      %83 = arith.index_cast %arg17 : i32 to index
      %c0_69 = arith.constant 0 : index
      %c0_70 = arith.constant 0 : index
      %84 = vector.load %arg16[%83, %c0_69, %c0_70] : memref<16x8x128xf32, #tpu.memory_space<vmem>>, vector<1x8x128xf32>
      %85 = vector.shape_cast %84 : vector<1x8x128xf32> to vector<8x128xf32>
      %86 = vector.shape_cast %82 : vector<8x128xf32> to vector<1x8x128xf32>
      tpu.vector_store %arg16[%83, %c0_69, %c0_70], %86 {strides = array<i32>} : memref<16x8x128xf32, #tpu.memory_space<vmem>>, vector<1x8x128xf32>,
      scf.yield %82, %80 : vector<8x128xf32>, vector<8x128xf32>
    }
    %c16_i32_17 = arith.constant 16 : i32
    %c0_18 = arith.constant 0 : index
    %c0_19 = arith.constant 0 : index
    %c0_20 = arith.constant 0 : index
    %16 = vector.load %arg13[%c0_18, %c0_19, %c0_20] : memref<2x8x128xf32, #tpu.memory_space<vmem>>, vector<1x8x128xf32>
    %17 = vector.shape_cast %16 : vector<1x8x128xf32> to vector<8x128xf32>
    %18 = vector.shape_cast %15#0 : vector<8x128xf32> to vector<1x8x128xf32>
    tpu.vector_store %arg13[%c0_18, %c0_19, %c0_20], %18 {strides = array<i32>} : memref<2x8x128xf32, #tpu.memory_space<vmem>>, vector<1x8x128xf32>,
    %c0_21 = arith.constant 0 : index
    %c0_22 = arith.constant 0 : index
    %c0_23 = arith.constant 0 : index
    %19 = vector.load %arg14[%c0_21, %c0_22, %c0_23] : memref<2x8x128xf32, #tpu.memory_space<vmem>>, vector<1x8x128xf32>
    %20 = vector.shape_cast %19 : vector<1x8x128xf32> to vector<8x128xf32>
    %21 = vector.shape_cast %15#1 : vector<8x128xf32> to vector<1x8x128xf32>
    tpu.vector_store %arg14[%c0_21, %c0_22, %c0_23], %21 {strides = array<i32>} : memref<2x8x128xf32, #tpu.memory_space<vmem>>, vector<1x8x128xf32>,
    %c0_24 = arith.constant 0 : index
    %c0_25 = arith.constant 0 : index
    %c0_26 = arith.constant 0 : index
    %22 = vector.load %arg16[%c0_24, %c0_25, %c0_26] : memref<16x8x128xf32, #tpu.memory_space<vmem>>, vector<16x8x128xf32>
    %23 = vector.shape_cast %22 : vector<16x8x128xf32> to vector<128x128xf32>
    %c0_27 = arith.constant 0 : index
    %c0_28 = arith.constant 0 : index
    %24 = vector.load %arg7[%c0_27, %c0_28] : memref<128x512xf32, #tpu.memory_space<vmem>>, vector<128x512xf32>
    %cst_29 = arith.constant dense<0.000000e+00> : vector<128x512xf32>
    %25 = tpu.matmul %23, %24, %cst_29 {dimension_numbers = #tpu.dot_dimension_numbers<[1], [0], [0], [1], [0, 0, 1, 1], [], []>} : vector<128x128xf32>, vector<128x512xf32>, vector<128x512xf32> -> vector<128x512xf32>
    %c0_30 = arith.constant 0 : index
    %c0_31 = arith.constant 0 : index
    %26 = vector.load %arg9[%c0_30, %c0_31] : memref<1x512xf32, #tpu.memory_space<vmem>>, vector<1x512xf32>
    %27 = vector.broadcast %26 : vector<1x512xf32> to vector<128x512xf32>
    %28 = arith.addf %25, %27 : vector<128x512xf32>
    %29 = vector.shape_cast %28 : vector<128x512xf32> to vector<16x8x512xf32>
    %c0_32 = arith.constant 0 : index
    %c0_33 = arith.constant 0 : index
    %c0_34 = arith.constant 0 : index
    %30 = vector.load %arg15[%c0_32, %c0_33, %c0_34] : memref<16x8x512xf32, #tpu.memory_space<vmem>>, vector<16x8x512xf32>
    tpu.vector_store %arg15[%c0_32, %c0_33, %c0_34], %29 {strides = array<i32>} : memref<16x8x512xf32, #tpu.memory_space<vmem>>, vector<16x8x512xf32>,
    %c0_35 = arith.constant 0 : index
    %c0_36 = arith.constant 0 : index
    %31 = vector.load %arg8[%c0_35, %c0_36] : memref<128x512xf32, #tpu.memory_space<vmem>>, vector<128x512xf32>
    %c1 = arith.constant 1 : index
    %c0_37 = arith.constant 0 : index
    %c0_38 = arith.constant 0 : index
    %32 = vector.load %arg2[%c1, %c0_37, %c0_38] : memref<2x8x128xf32, #tpu.memory_space<vmem>>, vector<1x8x128xf32>
    %33 = vector.shape_cast %32 : vector<1x8x128xf32> to vector<8x128xf32>
    %c1_39 = arith.constant 1 : index
    %c0_40 = arith.constant 0 : index
    %c0_41 = arith.constant 0 : index
    %34 = vector.load %arg3[%c1_39, %c0_40, %c0_41] : memref<2x8x128xf32, #tpu.memory_space<vmem>>, vector<1x8x128xf32>
    %35 = vector.shape_cast %34 : vector<1x8x128xf32> to vector<8x128xf32>
    %c0_i32_42 = arith.constant 0 : i32
    %c16_i32_43 = arith.constant 16 : i32
    %36 = arith.addi %c0_i32_42, %c16_i32_43 : i32
    %c1_i32_44 = arith.constant 1 : i32
    %37:2 = scf.for %arg17 = %c0_i32_42 to %36 step %c1_i32_44 iter_args(%arg18 = %33, %arg19 = %35) -> (vector<8x128xf32>, vector<8x128xf32>)  : i32 {
      %53 = arith.index_cast %arg17 : i32 to index
      %c0_63 = arith.constant 0 : index
      %c0_64 = arith.constant 0 : index
      %54 = vector.load %arg15[%53, %c0_63, %c0_64] : memref<16x8x512xf32, #tpu.memory_space<vmem>>, vector<1x8x512xf32>
      %55 = vector.shape_cast %54 : vector<1x8x512xf32> to vector<8x512xf32>
      %cst_65 = arith.constant dense<0.000000e+00> : vector<8x512xf32>
      %56 = tpu.matmul %arg18, %31, %cst_65 {dimension_numbers = #tpu.dot_dimension_numbers<[1], [0], [0], [1], [0, 0, 1, 1], [], []>} : vector<8x128xf32>, vector<128x512xf32>, vector<8x512xf32> -> vector<8x512xf32>
      %57 = arith.addf %55, %56 : vector<8x512xf32>
      %58 = vector.extract_strided_slice %57 {offsets = [0, 0], sizes = [8, 128], strides = [1, 1]} : vector<8x512xf32> to vector<8x128xf32>
      %59 = arith.negf %58 : vector<8x128xf32>
      %60 = math.exp %59 : vector<8x128xf32>
      %cst_66 = arith.constant 1.000000e+00 : f32
      %61 = vector.broadcast %cst_66 : f32 to vector<8x128xf32>
      %62 = arith.addf %61, %60 : vector<8x128xf32>
      %63 = arith.divf %61, %62 : vector<8x128xf32>
      %64 = vector.extract_strided_slice %57 {offsets = [0, 128], sizes = [8, 128], strides = [1, 1]} : vector<8x512xf32> to vector<8x128xf32>
      %65 = arith.negf %64 : vector<8x128xf32>
      %66 = math.exp %65 : vector<8x128xf32>
      %cst_67 = arith.constant 1.000000e+00 : f32
      %67 = vector.broadcast %cst_67 : f32 to vector<8x128xf32>
      %68 = arith.addf %67, %66 : vector<8x128xf32>
      %69 = arith.divf %67, %68 : vector<8x128xf32>
      %70 = vector.extract_strided_slice %57 {offsets = [0, 256], sizes = [8, 128], strides = [1, 1]} : vector<8x512xf32> to vector<8x128xf32>
      %71 = math.tanh %70 : vector<8x128xf32>
      %72 = vector.extract_strided_slice %57 {offsets = [0, 384], sizes = [8, 128], strides = [1, 1]} : vector<8x512xf32> to vector<8x128xf32>
      %73 = arith.negf %72 : vector<8x128xf32>
      %74 = math.exp %73 : vector<8x128xf32>
      %cst_68 = arith.constant 1.000000e+00 : f32
      %75 = vector.broadcast %cst_68 : f32 to vector<8x128xf32>
      %76 = arith.addf %75, %74 : vector<8x128xf32>
      %77 = arith.divf %75, %76 : vector<8x128xf32>
      %78 = arith.mulf %69, %arg19 : vector<8x128xf32>
      %79 = arith.mulf %63, %71 : vector<8x128xf32>
      %80 = arith.addf %78, %79 : vector<8x128xf32>
      %81 = math.tanh %80 : vector<8x128xf32>
      %82 = arith.mulf %77, %81 : vector<8x128xf32>
      %83 = arith.index_cast %arg17 : i32 to index
      %c0_69 = arith.constant 0 : index
      %c0_70 = arith.constant 0 : index
      %84 = vector.load %arg16[%83, %c0_69, %c0_70] : memref<16x8x128xf32, #tpu.memory_space<vmem>>, vector<1x8x128xf32>
      %85 = vector.shape_cast %84 : vector<1x8x128xf32> to vector<8x128xf32>
      %86 = vector.shape_cast %82 : vector<8x128xf32> to vector<1x8x128xf32>
      tpu.vector_store %arg16[%83, %c0_69, %c0_70], %86 {strides = array<i32>} : memref<16x8x128xf32, #tpu.memory_space<vmem>>, vector<1x8x128xf32>,
      scf.yield %82, %80 : vector<8x128xf32>, vector<8x128xf32>
    }
    %c16_i32_45 = arith.constant 16 : i32
    %c1_46 = arith.constant 1 : index
    %c0_47 = arith.constant 0 : index
    %c0_48 = arith.constant 0 : index
    %38 = vector.load %arg13[%c1_46, %c0_47, %c0_48] : memref<2x8x128xf32, #tpu.memory_space<vmem>>, vector<1x8x128xf32>
    %39 = vector.shape_cast %38 : vector<1x8x128xf32> to vector<8x128xf32>
    %40 = vector.shape_cast %37#0 : vector<8x128xf32> to vector<1x8x128xf32>
    tpu.vector_store %arg13[%c1_46, %c0_47, %c0_48], %40 {strides = array<i32>} : memref<2x8x128xf32, #tpu.memory_space<vmem>>, vector<1x8x128xf32>,
    %c1_49 = arith.constant 1 : index
    %c0_50 = arith.constant 0 : index
    %c0_51 = arith.constant 0 : index
    %41 = vector.load %arg14[%c1_49, %c0_50, %c0_51] : memref<2x8x128xf32, #tpu.memory_space<vmem>>, vector<1x8x128xf32>
    %42 = vector.shape_cast %41 : vector<1x8x128xf32> to vector<8x128xf32>
    %43 = vector.shape_cast %37#1 : vector<8x128xf32> to vector<1x8x128xf32>
    tpu.vector_store %arg14[%c1_49, %c0_50, %c0_51], %43 {strides = array<i32>} : memref<2x8x128xf32, #tpu.memory_space<vmem>>, vector<1x8x128xf32>,
    %c0_52 = arith.constant 0 : index
    %c0_53 = arith.constant 0 : index
    %c0_54 = arith.constant 0 : index
    %44 = vector.load %arg16[%c0_52, %c0_53, %c0_54] : memref<16x8x128xf32, #tpu.memory_space<vmem>>, vector<16x8x128xf32>
    %45 = vector.shape_cast %44 : vector<16x8x128xf32> to vector<128x128xf32>
    %c0_55 = arith.constant 0 : index
    %c0_56 = arith.constant 0 : index
    %46 = vector.load %arg10[%c0_55, %c0_56] : memref<128x128xf32, #tpu.memory_space<vmem>>, vector<128x128xf32>
    %cst_57 = arith.constant dense<0.000000e+00> : vector<128x128xf32>
    %47 = tpu.matmul %45, %46, %cst_57 {dimension_numbers = #tpu.dot_dimension_numbers<[1], [0], [0], [1], [0, 0, 1, 1], [], []>} : vector<128x128xf32>, vector<128x128xf32>, vector<128x128xf32> -> vector<128x128xf32>
    %c0_58 = arith.constant 0 : index
    %c0_59 = arith.constant 0 : index
    %48 = vector.load %arg11[%c0_58, %c0_59] : memref<1x128xf32, #tpu.memory_space<vmem>>, vector<1x128xf32>
    %49 = vector.broadcast %48 : vector<1x128xf32> to vector<128x128xf32>
    %50 = arith.addf %47, %49 : vector<128x128xf32>
    %51 = vector.shape_cast %50 : vector<128x128xf32> to vector<16x8x128xf32>
    %c0_60 = arith.constant 0 : index
    %c0_61 = arith.constant 0 : index
    %c0_62 = arith.constant 0 : index
    %52 = vector.load %arg12[%c0_60, %c0_61, %c0_62] : memref<16x8x128xf32, #tpu.memory_space<vmem>>, vector<16x8x128xf32>
    tpu.vector_store %arg12[%c0_60, %c0_61, %c0_62], %51 {strides = array<i32>} : memref<16x8x128xf32, #tpu.memory_space<vmem>>, vector<16x8x128xf32>,
    return
  }
  func.func @transform_0(%arg0: i32) -> (i32, i32, i32) {
    %c0_i32 = arith.constant 0 : i32
    %c0_i32_0 = arith.constant 0 : i32
    %c0_i32_1 = arith.constant 0 : i32
    %c0_i32_2 = arith.constant 0 : i32
    return %c0_i32, %c0_i32_0, %c0_i32_1 : i32, i32, i32
  }
  func.func @transform_1(%arg0: i32) -> (i32, i32, i32) {
    %c0_i32 = arith.constant 0 : i32
    %c0_i32_0 = arith.constant 0 : i32
    %c0_i32_1 = arith.constant 0 : i32
    %c0_i32_2 = arith.constant 0 : i32
    return %c0_i32, %c0_i32_0, %c0_i32_1 : i32, i32, i32
  }
  func.func @transform_2(%arg0: i32) -> (i32, i32, i32) {
    %c0_i32 = arith.constant 0 : i32
    %c0_i32_0 = arith.constant 0 : i32
    %c0_i32_1 = arith.constant 0 : i32
    %c0_i32_2 = arith.constant 0 : i32
    return %c0_i32, %c0_i32_0, %c0_i32_1 : i32, i32, i32
  }
  func.func @transform_3(%arg0: i32) -> (i32, i32) {
    %c0_i32 = arith.constant 0 : i32
    %c0_i32_0 = arith.constant 0 : i32
    %c0_i32_1 = arith.constant 0 : i32
    return %c0_i32, %c0_i32_0 : i32, i32
  }
  func.func @transform_4(%arg0: i32) -> (i32, i32) {
    %c0_i32 = arith.constant 0 : i32
    %c0_i32_0 = arith.constant 0 : i32
    %c0_i32_1 = arith.constant 0 : i32
    return %c0_i32, %c0_i32_0 : i32, i32
  }
  func.func @transform_5(%arg0: i32) -> (i32, i32) {
    %c0_i32 = arith.constant 0 : i32
    %c0_i32_0 = arith.constant 0 : i32
    %c0_i32_1 = arith.constant 0 : i32
    return %c0_i32, %c0_i32_0 : i32, i32
  }
  func.func @transform_6(%arg0: i32) -> (i32, i32) {
    %c0_i32 = arith.constant 0 : i32
    %c0_i32_0 = arith.constant 0 : i32
    %c0_i32_1 = arith.constant 0 : i32
    return %c0_i32, %c0_i32_0 : i32, i32
  }
  func.func @transform_7(%arg0: i32) -> (i32, i32) {
    %c0_i32 = arith.constant 0 : i32
    %c0_i32_0 = arith.constant 0 : i32
    %c0_i32_1 = arith.constant 0 : i32
    return %c0_i32, %c0_i32_0 : i32, i32
  }
  func.func @transform_8(%arg0: i32) -> (i32, i32) {
    %c0_i32 = arith.constant 0 : i32
    %c0_i32_0 = arith.constant 0 : i32
    %c0_i32_1 = arith.constant 0 : i32
    return %c0_i32, %c0_i32_0 : i32, i32
  }
  func.func @transform_9(%arg0: i32) -> (i32, i32) {
    %c0_i32 = arith.constant 0 : i32
    %c0_i32_0 = arith.constant 0 : i32
    %c0_i32_1 = arith.constant 0 : i32
    return %c0_i32, %c0_i32_0 : i32, i32
  }
  func.func @transform_10(%arg0: i32) -> (i32, i32) {
    %c0_i32 = arith.constant 0 : i32
    %c0_i32_0 = arith.constant 0 : i32
    %c0_i32_1 = arith.constant 0 : i32
    return %c0_i32, %c0_i32_0 : i32, i32
  }
  func.func @transform_11(%arg0: i32) -> (i32, i32, i32) {
    %c0_i32 = arith.constant 0 : i32
    %c0_i32_0 = arith.constant 0 : i32
    %c0_i32_1 = arith.constant 0 : i32
    %c0_i32_2 = arith.constant 0 : i32
    return %c0_i32, %c0_i32_0, %c0_i32_1 : i32, i32, i32
  }
  func.func @transform_12(%arg0: i32) -> (i32, i32, i32) {
    %c0_i32 = arith.constant 0 : i32
    %c0_i32_0 = arith.constant 0 : i32
    %c0_i32_1 = arith.constant 0 : i32
    %c0_i32_2 = arith.constant 0 : i32
    return %c0_i32, %c0_i32_0, %c0_i32_1 : i32, i32, i32
  }
  func.func @transform_13(%arg0: i32) -> (i32, i32, i32) {
    %c0_i32 = arith.constant 0 : i32
    %c0_i32_0 = arith.constant 0 : i32
    %c0_i32_1 = arith.constant 0 : i32
    %c0_i32_2 = arith.constant 0 : i32
    return %c0_i32, %c0_i32_0, %c0_i32_1 : i32, i32, i32
  }
}

</mosaic_0001>

<llo_original>
// kernel: char_rnn_forward.1
$region0: #{char_rnn_forward.1}
  #allocation0 [shape = 'u32[]', space=smem, size = 0x4, offset = 0x4, fixed_abs, tag = 'smem constant byte address 0x4 - core index']
  #allocation1 [shape = 'u32[144,128]{1,0:T(1,128)}', space=vmem, size = 0x12000, scoped, tag = 'internal scratch']
  #allocation2 [shape = 'f32[16,8,512]{2,1,0:T(8,128)}', space=vmem, size = 0x40000, scoped, tag = 'scratch operand']
  #allocation3 [shape = 'f32[16,8,128]{2,1,0:T(8,128)}', space=vmem, size = 0x10000, scoped, tag = 'scratch operand']
  %s0 = inlined_call_operand.vmem [shape: f32[16,8,128], index: 0, kind: input, shape index: {}]
  %s1 = inlined_call_operand.vmem [shape: f32[2,8,128], index: 1, kind: input, shape index: {}]
  %s2 = inlined_call_operand.vmem [shape: f32[2,8,128], index: 2, kind: input, shape index: {}]
  %s3 = inlined_call_operand.vmem [shape: f32[128,512], index: 3, kind: input, shape index: {}]
  %s4 = inlined_call_operand.vmem [shape: f32[128,512], index: 4, kind: input, shape index: {}]
  %s5 = inlined_call_operand.vmem [shape: f32[1,512], index: 5, kind: input, shape index: {}]
  %s6 = inlined_call_operand.vmem [shape: f32[128,512], index: 6, kind: input, shape index: {}]
  %s7 = inlined_call_operand.vmem [shape: f32[128,512], index: 7, kind: input, shape index: {}]
  %s8 = inlined_call_operand.vmem [shape: f32[1,512], index: 8, kind: input, shape index: {}]
  %s9 = inlined_call_operand.vmem [shape: f32[128,128], index: 9, kind: input, shape index: {}]
  %s10 = inlined_call_operand.vmem [shape: f32[1,128], index: 10, kind: input, shape index: {}]
  %s11 = inlined_call_operand.vmem [shape: f32[16,8,128], index: 11, kind: output, shape index: {0}]
  %s12 = inlined_call_operand.hbm [shape: f32[2,8,128], index: 12, kind: output, shape index: {1}]
  %s13 = inlined_call_operand.hbm [shape: f32[2,8,128], index: 13, kind: output, shape index: {2}]
  %14 = xla_tuple %s11, %s12, %s13
  %s15 = sld [smem:[#allocation0]]
  $region84: #{char_rnn_forward.1} parent=0
    _
  %s17 = ssub.s32 1, %s15
  %s18 = scalar_select 0, %s17, %s15
  $region1: #{char_rnn_forward.1} parent=0
    #allocation4 [shape = 'u8[8192]{0}', space=vmem, size = 0x2000, scoped, tag = 'output window, operand 1, single buffered']
    #allocation5 [shape = 's32[1]{0}', space=sflag, size = 0x4, scoped, tag = 'scoped memory for char_rnn_forward.1']
    #allocation6 [shape = 'u8[8192]{0}', space=vmem, size = 0x2000, scoped, tag = 'output window, operand 2, single buffered']
    #allocation7 [shape = 's32[1]{0}', space=sflag, size = 0x4, scoped, tag = 'scoped memory for char_rnn_forward.1']
    %19 = vsyncpa [#allocation5], 0
    %20 = vsyncpa [#allocation7], 0
    // Predicated region
    $region2: #{char_rnn_forward.1} parent=1 // pred_check
      _
    $region3: #{char_rnn_forward.1} parent=1 // pred_check_branch
      %22 = sbr.rel (0) target = $region5
    $region4: #{char_rnn_forward.1} parent=1 // pred_region
      _
    $region5: #{char_rnn_forward.1} parent=1 // pred_fallthru
      _
    // Predicated region
    $region6: #{char_rnn_forward.1} parent=1 // pred_check
      _
    $region7: #{char_rnn_forward.1} parent=1 // pred_check_branch
      %24 = sbr.rel (0) target = $region9
    $region8: #{char_rnn_forward.1} parent=1 // pred_region
      _
    $region9: #{char_rnn_forward.1} parent=1 // pred_fallthru
      _
    // Predicated region
    $region10: #{char_rnn_forward.1} parent=1 // pred_check
      _
    $region11: #{char_rnn_forward.1} parent=1 // pred_check_branch
      %26 = sbr.rel (0) target = $region13
    $region12: #{char_rnn_forward.1} parent=1 // pred_region
      _
    $region13: #{char_rnn_forward.1} parent=1 // pred_fallthru
      _
    // Predicated region
    $region14: #{char_rnn_forward.1} parent=1 // pred_check
      _
    $region15: #{char_rnn_forward.1} parent=1 // pred_check_branch
      %28 = sbr.rel (0) target = $region17
    $region16: #{char_rnn_forward.1} parent=1 // pred_region
      _
    $region17: #{char_rnn_forward.1} parent=1 // pred_fallthru
      _
    // Predicated region
    $region18: #{char_rnn_forward.1} parent=1 // pred_check
      _
    $region19: #{char_rnn_forward.1} parent=1 // pred_check_branch
      %30 = sbr.rel (0) target = $region21
    $region20: #{char_rnn_forward.1} parent=1 // pred_region
      _
    $region21: #{char_rnn_forward.1} parent=1 // pred_fallthru
      _
    // Predicated region
    $region22: #{char_rnn_forward.1} parent=1 // pred_check
      _
    $region23: #{char_rnn_forward.1} parent=1 // pred_check_branch
      %32 = sbr.rel (0) target = $region25
    $region24: #{char_rnn_forward.1} parent=1 // pred_region
      _
    $region25: #{char_rnn_forward.1} parent=1 // pred_fallthru
      _
    // Predicated region
    $region26: #{char_rnn_forward.1} parent=1 // pred_check
      _
    $region27: #{char_rnn_forward.1} parent=1 // pred_check_branch
      %34 = sbr.rel (0) target = $region29
    $region28: #{char_rnn_forward.1} parent=1 // pred_region
      _
    $region29: #{char_rnn_forward.1} parent=1 // pred_fallthru
      _
    // Predicated region
    $region30: #{char_rnn_forward.1} parent=1 // pred_check
      _
    $region31: #{char_rnn_forward.1} parent=1 // pred_check_branch
      %36 = sbr.rel (0) target = $region33
    $region32: #{char_rnn_forward.1} parent=1 // pred_region
      _
    $region33: #{char_rnn_forward.1} parent=1 // pred_fallthru
      _
    // Predicated region
    $region34: #{char_rnn_forward.1} parent=1 // pred_check
      _
    $region35: #{char_rnn_forward.1} parent=1 // pred_check_branch
      %38 = sbr.rel (0) target = $region37
    $region36: #{char_rnn_forward.1} parent=1 // pred_region
      _
    $region37: #{char_rnn_forward.1} parent=1 // pred_fallthru
      _
    // Predicated region
    $region38: #{char_rnn_forward.1} parent=1 // pred_check
      _
    $region39: #{char_rnn_forward.1} parent=1 // pred_check_branch
      %40 = sbr.rel (0) target = $region41
    $region40: #{char_rnn_forward.1} parent=1 // pred_region
      _
    $region41: #{char_rnn_forward.1} parent=1 // pred_fallthru
      _
    // Predicated region
    $region42: #{char_rnn_forward.1} parent=1 // pred_check
      _
    $region43: #{char_rnn_forward.1} parent=1 // pred_check_branch
      %42 = sbr.rel (0) target = $region45
    $region44: #{char_rnn_forward.1} parent=1 // pred_region
      _
    $region45: #{char_rnn_forward.1} parent=1 // pred_fallthru
      _
    %v43 = vld [vmem:[%s0] sm:$0xff]
    %v44 = vld [vmem:[%s0 + $0x8] sm:$0xff]
    %v45 = vld [vmem:[%s0 + $0x10] sm:$0xff]
    %v46 = vld [vmem:[%s0 + $0x18] sm:$0xff]
    %v47 = vld [vmem:[%s0 + $0x20] sm:$0xff]
    %v48 = vld [vmem:[%s0 + $0x28] sm:$0xff]
    %v49 = vld [vmem:[%s0 + $0x30] sm:$0xff]
    %v50 = vld [vmem:[%s0 + $0x38] sm:$0xff]
    %v51 = vld [vmem:[%s0 + $0x40] sm:$0xff]
    %v52 = vld [vmem:[%s0 + $0x48] sm:$0xff]
    %v53 = vld [vmem:[%s0 + $0x50] sm:$0xff]
    %v54 = vld [vmem:[%s0 + $0x58] sm:$0xff]
    %v55 = vld [vmem:[%s0 + $0x60] sm:$0xff]
    %v56 = vld [vmem:[%s0 + $0x68] sm:$0xff]
    %v57 = vld [vmem:[%s0 + $0x70] sm:$0xff]
    %v58 = vld [vmem:[%s0 + $0x78] sm:$0xff]
    %v59 = vld [vmem:[%s3] sm:$0xff]
    %v60 = vld [vmem:[%s3 + $0x8] sm:$0xff]
    %v61 = vld [vmem:[%s3 + $0x10] sm:$0xff]
    %v62 = vld [vmem:[%s3 + $0x18] sm:$0xff]
    %v63 = vld [vmem:[%s3 + $0x20] sm:$0xff]
    %v64 = vld [vmem:[%s3 + $0x28] sm:$0xff]
    %v65 = vld [vmem:[%s3 + $0x30] sm:$0xff]
    %v66 = vld [vmem:[%s3 + $0x38] sm:$0xff]
    %v67 = vld [vmem:[%s3 + $0x40] sm:$0xff]
    %v68 = vld [vmem:[%s3 + $0x48] sm:$0xff]
    %v69 = vld [vmem:[%s3 + $0x50] sm:$0xff]
    %v70 = vld [vmem:[%s3 + $0x58] sm:$0xff]
    %v71 = vld [vmem:[%s3 + $0x60] sm:$0xff]
    %v72 = vld [vmem:[%s3 + $0x68] sm:$0xff]
    %v73 = vld [vmem:[%s3 + $0x70] sm:$0xff]
    %v74 = vld [vmem:[%s3 + $0x78] sm:$0xff]
    %v75 = vld [vmem:[%s3 + $0x80] sm:$0xff]
    %v76 = vld [vmem:[%s3 + $0x88] sm:$0xff]
    %v77 = vld [vmem:[%s3 + $0x90] sm:$0xff]
    %v78 = vld [vmem:[%s3 + $0x98] sm:$0xff]
    %v79 = vld [vmem:[%s3 + $0xa0] sm:$0xff]
    %v80 = vld [vmem:[%s3 + $0xa8] sm:$0xff]
    %v81 = vld [vmem:[%s3 + $0xb0] sm:$0xff]
    %v82 = vld [vmem:[%s3 + $0xb8] sm:$0xff]
    %v83 = vld [vmem:[%s3 + $0xc0] sm:$0xff]
    %v84 = vld [vmem:[%s3 + $0xc8] sm:$0xff]
    %v85 = vld [vmem:[%s3 + $0xd0] sm:$0xff]
    %v86 = vld [vmem:[%s3 + $0xd8] sm:$0xff]
    %v87 = vld [vmem:[%s3 + $0xe0] sm:$0xff]
    %v88 = vld [vmem:[%s3 + $0xe8] sm:$0xff]
    %v89 = vld [vmem:[%s3 + $0xf0] sm:$0xff]
    %v90 = vld [vmem:[%s3 + $0xf8] sm:$0xff]
    %v91 = vld [vmem:[%s3 + $0x100] sm:$0xff]
    %v92 = vld [vmem:[%s3 + $0x108] sm:$0xff]
    %v93 = vld [vmem:[%s3 + $0x110] sm:$0xff]
    %v94 = vld [vmem:[%s3 + $0x118] sm:$0xff]
    %v95 = vld [vmem:[%s3 + $0x120] sm:$0xff]
    %v96 = vld [vmem:[%s3 + $0x128] sm:$0xff]
    %v97 = vld [vmem:[%s3 + $0x130] sm:$0xff]
    %v98 = vld [vmem:[%s3 + $0x138] sm:$0xff]
    %v99 = vld [vmem:[%s3 + $0x140] sm:$0xff]
    %v100 = vld [vmem:[%s3 + $0x148] sm:$0xff]
    %v101 = vld [vmem:[%s3 + $0x150] sm:$0xff]
    %v102 = vld [vmem:[%s3 + $0x158] sm:$0xff]
    %v103 = vld [vmem:[%s3 + $0x160] sm:$0xff]
    %v104 = vld [vmem:[%s3 + $0x168] sm:$0xff]
    %v105 = vld [vmem:[%s3 + $0x170] sm:$0xff]
    %v106 = vld [vmem:[%s3 + $0x178] sm:$0xff]
    %v107 = vld [vmem:[%s3 + $0x180] sm:$0xff]
    %v108 = vld [vmem:[%s3 + $0x188] sm:$0xff]
    %v109 = vld [vmem:[%s3 + $0x190] sm:$0xff]
    %v110 = vld [vmem:[%s3 + $0x198] sm:$0xff]
    %v111 = vld [vmem:[%s3 + $0x1a0] sm:$0xff]
    %v112 = vld [vmem:[%s3 + $0x1a8] sm:$0xff]
    %v113 = vld [vmem:[%s3 + $0x1b0] sm:$0xff]
    %v114 = vld [vmem:[%s3 + $0x1b8] sm:$0xff]
    %v115 = vld [vmem:[%s3 + $0x1c0] sm:$0xff]
    %v116 = vld [vmem:[%s3 + $0x1c8] sm:$0xff]
    %v117 = vld [vmem:[%s3 + $0x1d0] sm:$0xff]
    %v118 = vld [vmem:[%s3 + $0x1d8] sm:$0xff]
    %v119 = vld [vmem:[%s3 + $0x1e0] sm:$0xff]
    %v120 = vld [vmem:[%s3 + $0x1e8] sm:$0xff]
    %v121 = vld [vmem:[%s3 + $0x1f0] sm:$0xff]
    %v122 = vld [vmem:[%s3 + $0x1f8] sm:$0xff]
    %v123 = vld [vmem:[%s5] sm:$0xf]
    %v125 = vlaneseq
    %v126 = vshrl.u32 %v125, 7
    %v127 = vsub.s32 0, %v126
    %v128 = vrot.slane %v123, %v127
    %v129 = vlaneseq
    %v130 = vshrl.u32 %v129, 7
    %v131 = vsub.s32 1, %v130
    %v132 = vrot.slane %v123, %v131
    %v133 = vlaneseq
    %v134 = vshrl.u32 %v133, 7
    %v135 = vsub.s32 2, %v134
    %v136 = vrot.slane %v123, %v135
    %v137 = vlaneseq
    %v138 = vshrl.u32 %v137, 7
    %v139 = vsub.s32 3, %v138
    %v140 = vrot.slane %v123, %v139
    %145 = vmatprep.subr.mxu0 %v120
    %146 = vmatpush1.msra.mxu0 %v119
    %147 = vmatprep.subr.mxu0 %v116
    %148 = vmatpush1.msra.mxu0 %v115
    %149 = vmatprep.subr.mxu0 %v112
    %150 = vmatpush1.msra.mxu0 %v111
    %151 = vmatprep.subr.mxu0 %v108
    %152 = vmatpush1.msra.mxu0 %v107
    %153 = vmatprep.subr.mxu0 %v104
    %154 = vmatpush1.msra.mxu0 %v103
    %155 = vmatprep.subr.mxu0 %v100
    %156 = vmatpush1.msra.mxu0 %v99
    %157 = vmatprep.subr.mxu0 %v96
    %158 = vmatpush1.msra.mxu0 %v95
    %159 = vmatprep.subr.mxu0 %v92
    %160 = vmatpush1.msra.mxu0 %v91
    %161 = vmatprep.subr.mxu0 %v88
    %162 = vmatpush1.msra.mxu0 %v87
    %163 = vmatprep.subr.mxu0 %v84
    %164 = vmatpush1.msra.mxu0 %v83
    %165 = vmatprep.subr.mxu0 %v80
    %166 = vmatpush1.msra.mxu0 %v79
    %167 = vmatprep.subr.mxu0 %v76
    %168 = vmatpush1.msra.mxu0 %v75
    %169 = vmatprep.subr.mxu0 %v72
    %170 = vmatpush1.msra.mxu0 %v71
    %171 = vmatprep.subr.mxu0 %v68
    %172 = vmatpush1.msra.mxu0 %v67
    %173 = vmatprep.subr.mxu0 %v64
    %174 = vmatpush1.msra.mxu0 %v63
    %175 = vmatprep.subr.mxu0 %v60
    %176 = vmatpush1.msra.mxu0 %v59
    %177 = vmatprep.subr.mxu0 0.0
    %178 = vmatpush2.msra.mxu0 0.0
    %179 = vmatprep.subr.mxu0 0.0
    %180 = vmatpush2.msra.mxu0 0.0
    %181 = vmatprep.subr.mxu0 0.0
    %182 = vmatpush2.msra.mxu0 0.0
    %183 = vmatprep.subr.mxu0 0.0
    %184 = vmatpush2.msra.mxu0 0.0
    %185 = vmatprep.subr.mxu0 0.0
    %186 = vmatpush2.msra.mxu0 0.0
    %187 = vmatprep.subr.mxu0 0.0
    %188 = vmatpush2.msra.mxu0 0.0
    %189 = vmatprep.subr.mxu0 0.0
    %190 = vmatpush2.msra.mxu0 0.0
    %191 = vmatprep.subr.mxu0 0.0
    %192 = vmatpush2.msra.mxu0 0.0
    %193 = vmatprep.subr.mxu0 0.0
    %194 = vmatpush2.msra.mxu0 0.0
    %195 = vmatprep.subr.mxu0 0.0
    %196 = vmatpush2.msra.mxu0 0.0
    %197 = vmatprep.subr.mxu0 0.0
    %198 = vmatpush2.msra.mxu0 0.0
    %199 = vmatprep.subr.mxu0 0.0
    %200 = vmatpush2.msra.mxu0 0.0
    %201 = vmatprep.subr.mxu0 0.0
    %202 = vmatpush2.msra.mxu0 0.0
    %203 = vmatprep.subr.mxu0 0.0
    %204 = vmatpush2.msra.mxu0 0.0
    %205 = vmatprep.subr.mxu0 0.0
    %206 = vmatpush2.msra.mxu0 0.0
    %207 = vmatprep.subr.mxu0 0.0
    %208 = vmatpush2.msra.mxu0 0.0
    %209 = vmatprep.mubr.f32.mxu0 0.0
    %210 = vmatmul.mubr.f32.gmra.mxu0 %v43
    %v211 = vpop.f32.mrf.mxu0
    %v212 = vadd.f32 %v128, %v211
    %v213 = vpop.f32.mrf.mxu0
    %v214 = vadd.f32 %v132, %v213
    %215 = vmatprep.mubr.f32.mxu0 0.0
    %216 = vmatmul.mubr.f32.gmra.mxu0 %v44
    %v217 = vpop.f32.mrf.mxu0
    %v218 = vadd.f32 %v128, %v217
    %v219 = vpop.f32.mrf.mxu0
    %v220 = vadd.f32 %v132, %v219
    %221 = vmatprep.mubr.f32.mxu0 0.0
    %222 = vmatmul.mubr.f32.gmra.mxu0 %v45
    %v223 = vpop.f32.mrf.mxu0
    %v224 = vadd.f32 %v128, %v223
    %v225 = vpop.f32.mrf.mxu0
    %v226 = vadd.f32 %v132, %v225
    %227 = vmatprep.mubr.f32.mxu0 0.0
    %228 = vmatmul.mubr.f32.gmra.mxu0 %v46
    %v229 = vpop.f32.mrf.mxu0
    %v230 = vadd.f32 %v128, %v229
    %v231 = vpop.f32.mrf.mxu0
    %v232 = vadd.f32 %v132, %v231
    %233 = vmatprep.mubr.f32.mxu0 0.0
    %234 = vmatmul.mubr.f32.gmra.mxu0 %v47
    %v235 = vpop.f32.mrf.mxu0
    %v236 = vadd.f32 %v128, %v235
    %v237 = vpop.f32.mrf.mxu0
    %v238 = vadd.f32 %v132, %v237
    %239 = vmatprep.mubr.f32.mxu0 0.0
    %240 = vmatmul.mubr.f32.gmra.mxu0 %v48
    %v241 = vpop.f32.mrf.mxu0
    %v242 = vadd.f32 %v128, %v241
    %v243 = vpop.f32.mrf.mxu0
    %v244 = vadd.f32 %v132, %v243
    %245 = vmatprep.mubr.f32.mxu0 0.0
    %246 = vmatmul.mubr.f32.gmra.mxu0 %v49
    %v247 = vpop.f32.mrf.mxu0
    %v248 = vadd.f32 %v128, %v247
    %v249 = vpop.f32.mrf.mxu0
    %v250 = vadd.f32 %v132, %v249
    %251 = vmatprep.mubr.f32.mxu0 0.0
    %252 = vmatmul.mubr.f32.gmra.mxu0 %v50
    %v253 = vpop.f32.mrf.mxu0
    %v254 = vadd.f32 %v128, %v253
    %v255 = vpop.f32.mrf.mxu0
    %v256 = vadd.f32 %v132, %v255
    %257 = vmatprep.mubr.f32.mxu0 0.0
    %258 = vmatmul.mubr.f32.gmra.mxu0 %v51
    %v259 = vpop.f32.mrf.mxu0
    %v260 = vadd.f32 %v128, %v259
    %v261 = vpop.f32.mrf.mxu0
    %v262 = vadd.f32 %v132, %v261
    %263 = vmatprep.mubr.f32.mxu0 0.0
    %264 = vmatmul.mubr.f32.gmra.mxu0 %v52
    %v265 = vpop.f32.mrf.mxu0
    %v266 = vadd.f32 %v128, %v265
    %v267 = vpop.f32.mrf.mxu0
    %v268 = vadd.f32 %v132, %v267
    %269 = vmatprep.mubr.f32.mxu0 0.0
    %270 = vmatmul.mubr.f32.gmra.mxu0 %v53
    %v271 = vpop.f32.mrf.mxu0
    %v272 = vadd.f32 %v128, %v271
    %v273 = vpop.f32.mrf.mxu0
    %v274 = vadd.f32 %v132, %v273
    %275 = vmatprep.mubr.f32.mxu0 0.0
    %276 = vmatmul.mubr.f32.gmra.mxu0 %v54
    %v277 = vpop.f32.mrf.mxu0
    %v278 = vadd.f32 %v128, %v277
    %v279 = vpop.f32.mrf.mxu0
    %v280 = vadd.f32 %v132, %v279
    %281 = vmatprep.mubr.f32.mxu0 0.0
    %282 = vmatmul.mubr.f32.gmra.mxu0 %v55
    %v283 = vpop.f32.mrf.mxu0
    %v284 = vadd.f32 %v128, %v283
    %v285 = vpop.f32.mrf.mxu0
    %v286 = vadd.f32 %v132, %v285
    %287 = vmatprep.mubr.f32.mxu0 0.0
    %288 = vmatmul.mubr.f32.gmra.mxu0 %v56
    %v289 = vpop.f32.mrf.mxu0
    %v290 = vadd.f32 %v128, %v289
    %v291 = vpop.f32.mrf.mxu0
    %v292 = vadd.f32 %v132, %v291
    %293 = vmatprep.mubr.f32.mxu0 0.0
    %294 = vmatmul.mubr.f32.gmra.mxu0 %v57
    %v295 = vpop.f32.mrf.mxu0
    %v296 = vadd.f32 %v128, %v295
    %v297 = vpop.f32.mrf.mxu0
    %v298 = vadd.f32 %v132, %v297
    %299 = vmatprep.mubr.f32.mxu0 0.0
    %300 = vmatmul.mubr.f32.gmra.mxu0 %v58
    %v301 = vpop.f32.mrf.mxu0
    %v302 = vadd.f32 %v128, %v301
    %v303 = vpop.f32.mrf.mxu0
    %v304 = vadd.f32 %v132, %v303
    %305 = vdwg.mxu0
    %306 = vmatprep.subr.mxu0 %v122
    %307 = vmatpush1.msra.mxu0 %v121
    %308 = vmatprep.subr.mxu0 %v118
    %309 = vmatpush1.msra.mxu0 %v117
    %310 = vmatprep.subr.mxu0 %v114
    %311 = vmatpush1.msra.mxu0 %v113
    %312 = vmatprep.subr.mxu0 %v110
    %313 = vmatpush1.msra.mxu0 %v109
    %314 = vmatprep.subr.mxu0 %v106
    %315 = vmatpush1.msra.mxu0 %v105
    %316 = vmatprep.subr.mxu0 %v102
    %317 = vmatpush1.msra.mxu0 %v101
    %318 = vmatprep.subr.mxu0 %v98
    %319 = vmatpush1.msra.mxu0 %v97
    %320 = vmatprep.subr.mxu0 %v94
    %321 = vmatpush1.msra.mxu0 %v93
    %322 = vmatprep.subr.mxu0 %v90
    %323 = vmatpush1.msra.mxu0 %v89
    %324 = vmatprep.subr.mxu0 %v86
    %325 = vmatpush1.msra.mxu0 %v85
    %326 = vmatprep.subr.mxu0 %v82
    %327 = vmatpush1.msra.mxu0 %v81
    %328 = vmatprep.subr.mxu0 %v78
    %329 = vmatpush1.msra.mxu0 %v77
    %330 = vmatprep.subr.mxu0 %v74
    %331 = vmatpush1.msra.mxu0 %v73
    %332 = vmatprep.subr.mxu0 %v70
    %333 = vmatpush1.msra.mxu0 %v69
    %334 = vmatprep.subr.mxu0 %v66
    %335 = vmatpush1.msra.mxu0 %v65
    %336 = vmatprep.subr.mxu0 %v62
    %337 = vmatpush1.msra.mxu0 %v61
    %338 = vmatprep.subr.mxu0 0.0
    %339 = vmatpush2.msra.mxu0 0.0
    %340 = vmatprep.subr.mxu0 0.0
    %341 = vmatpush2.msra.mxu0 0.0
    %342 = vmatprep.subr.mxu0 0.0
    %343 = vmatpush2.msra.mxu0 0.0
    %344 = vmatprep.subr.mxu0 0.0
    %345 = vmatpush2.msra.mxu0 0.0
    %346 = vmatprep.subr.mxu0 0.0
    %347 = vmatpush2.msra.mxu0 0.0
    %348 = vmatprep.subr.mxu0 0.0
    %349 = vmatpush2.msra.mxu0 0.0
    %350 = vmatprep.subr.mxu0 0.0
    %351 = vmatpush2.msra.mxu0 0.0
    %352 = vmatprep.subr.mxu0 0.0
    %353 = vmatpush2.msra.mxu0 0.0
    %354 = vmatprep.subr.mxu0 0.0
    %355 = vmatpush2.msra.mxu0 0.0
    %356 = vmatprep.subr.mxu0 0.0
    %357 = vmatpush2.msra.mxu0 0.0
    %358 = vmatprep.subr.mxu0 0.0
    %359 = vmatpush2.msra.mxu0 0.0
    %360 = vmatprep.subr.mxu0 0.0
    %361 = vmatpush2.msra.mxu0 0.0
    %362 = vmatprep.subr.mxu0 0.0
    %363 = vmatpush2.msra.mxu0 0.0
    %364 = vmatprep.subr.mxu0 0.0
    %365 = vmatpush2.msra.mxu0 0.0
    %366 = vmatprep.subr.mxu0 0.0
    %367 = vmatpush2.msra.mxu0 0.0
    %368 = vmatprep.subr.mxu0 0.0
    %369 = vmatpush2.msra.mxu0 0.0
    %370 = vmatprep.mubr.f32.mxu0 0.0
    %371 = vmatmul.mubr.f32.gmra.mxu0 %v43
    %v372 = vpop.f32.mrf.mxu0
    %v373 = vadd.f32 %v136, %v372
    %v374 = vpop.f32.mrf.mxu0
    %v375 = vadd.f32 %v140, %v374
    %376 = vmatprep.mubr.f32.mxu0 0.0
    %377 = vmatmul.mubr.f32.gmra.mxu0 %v44
    %v378 = vpop.f32.mrf.mxu0
    %v379 = vadd.f32 %v136, %v378
    %v380 = vpop.f32.mrf.mxu0
    %v381 = vadd.f32 %v140, %v380
    %382 = vmatprep.mubr.f32.mxu0 0.0
    %383 = vmatmul.mubr.f32.gmra.mxu0 %v45
    %v384 = vpop.f32.mrf.mxu0
    %v385 = vadd.f32 %v136, %v384
    %v386 = vpop.f32.mrf.mxu0
    %v387 = vadd.f32 %v140, %v386
    %388 = vmatprep.mubr.f32.mxu0 0.0
    %389 = vmatmul.mubr.f32.gmra.mxu0 %v46
    %v390 = vpop.f32.mrf.mxu0
    %v391 = vadd.f32 %v136, %v390
    %v392 = vpop.f32.mrf.mxu0
    %v393 = vadd.f32 %v140, %v392
    %394 = vmatprep.mubr.f32.mxu0 0.0
    %395 = vmatmul.mubr.f32.gmra.mxu0 %v47
    %v396 = vpop.f32.mrf.mxu0
    %v397 = vadd.f32 %v136, %v396
    %v398 = vpop.f32.mrf.mxu0
    %v399 = vadd.f32 %v140, %v398
    %400 = vmatprep.mubr.f32.mxu0 0.0
    %401 = vmatmul.mubr.f32.gmra.mxu0 %v48
    %v402 = vpop.f32.mrf.mxu0
    %v403 = vadd.f32 %v136, %v402
    %v404 = vpop.f32.mrf.mxu0
    %v405 = vadd.f32 %v140, %v404
    %406 = vmatprep.mubr.f32.mxu0 0.0
    %407 = vmatmul.mubr.f32.gmra.mxu0 %v49
    %v408 = vpop.f32.mrf.mxu0
    %v409 = vadd.f32 %v136, %v408
    %v410 = vpop.f32.mrf.mxu0
    %v411 = vadd.f32 %v140, %v410
    %412 = vmatprep.mubr.f32.mxu0 0.0
    %413 = vmatmul.mubr.f32.gmra.mxu0 %v50
    %v414 = vpop.f32.mrf.mxu0
    %v415 = vadd.f32 %v136, %v414
    %v416 = vpop.f32.mrf.mxu0
    %v417 = vadd.f32 %v140, %v416
    %418 = vmatprep.mubr.f32.mxu0 0.0
    %419 = vmatmul.mubr.f32.gmra.mxu0 %v51
    %v420 = vpop.f32.mrf.mxu0
    %v421 = vadd.f32 %v136, %v420
    %v422 = vpop.f32.mrf.mxu0
    %v423 = vadd.f32 %v140, %v422
    %424 = vmatprep.mubr.f32.mxu0 0.0
    %425 = vmatmul.mubr.f32.gmra.mxu0 %v52
    %v426 = vpop.f32.mrf.mxu0
    %v427 = vadd.f32 %v136, %v426
    %v428 = vpop.f32.mrf.mxu0
    %v429 = vadd.f32 %v140, %v428
    %430 = vmatprep.mubr.f32.mxu0 0.0
    %431 = vmatmul.mubr.f32.gmra.mxu0 %v53
    %v432 = vpop.f32.mrf.mxu0
    %v433 = vadd.f32 %v136, %v432
    %v434 = vpop.f32.mrf.mxu0
    %v435 = vadd.f32 %v140, %v434
    %436 = vmatprep.mubr.f32.mxu0 0.0
    %437 = vmatmul.mubr.f32.gmra.mxu0 %v54
    %v438 = vpop.f32.mrf.mxu0
    %v439 = vadd.f32 %v136, %v438
    %v440 = vpop.f32.mrf.mxu0
    %v441 = vadd.f32 %v140, %v440
    %442 = vmatprep.mubr.f32.mxu0 0.0
    %443 = vmatmul.mubr.f32.gmra.mxu0 %v55
    %v444 = vpop.f32.mrf.mxu0
    %v445 = vadd.f32 %v136, %v444
    %v446 = vpop.f32.mrf.mxu0
    %v447 = vadd.f32 %v140, %v446
    %448 = vmatprep.mubr.f32.mxu0 0.0
    %449 = vmatmul.mubr.f32.gmra.mxu0 %v56
    %v450 = vpop.f32.mrf.mxu0
    %v451 = vadd.f32 %v136, %v450
    %v452 = vpop.f32.mrf.mxu0
    %v453 = vadd.f32 %v140, %v452
    %454 = vmatprep.mubr.f32.mxu0 0.0
    %455 = vmatmul.mubr.f32.gmra.mxu0 %v57
    %v456 = vpop.f32.mrf.mxu0
    %v457 = vadd.f32 %v136, %v456
    %v458 = vpop.f32.mrf.mxu0
    %v459 = vadd.f32 %v140, %v458
    %460 = vmatprep.mubr.f32.mxu0 0.0
    %461 = vmatmul.mubr.f32.gmra.mxu0 %v58
    %v462 = vpop.f32.mrf.mxu0
    %v463 = vadd.f32 %v136, %v462
    %v464 = vpop.f32.mrf.mxu0
    %v465 = vadd.f32 %v140, %v464
    %466 = vdwg.mxu0
    %467 = vst [vmem:[#allocation2] sm:$0xff] %v212
    %468 = vst [vmem:[#allocation2 + $0x8] sm:$0xff] %v214
    %469 = vst [vmem:[#allocation2 + $0x10] sm:$0xff] %v373
    %470 = vst [vmem:[#allocation2 + $0x18] sm:$0xff] %v375
    %471 = vst [vmem:[#allocation2 + $0x20] sm:$0xff] %v218
    %472 = vst [vmem:[#allocation2 + $0x28] sm:$0xff] %v220
    %473 = vst [vmem:[#allocation2 + $0x30] sm:$0xff] %v379
    %474 = vst [vmem:[#allocation2 + $0x38] sm:$0xff] %v381
    %475 = vst [vmem:[#allocation2 + $0x40] sm:$0xff] %v224
    %476 = vst [vmem:[#allocation2 + $0x48] sm:$0xff] %v226
    %477 = vst [vmem:[#allocation2 + $0x50] sm:$0xff] %v385
    %478 = vst [vmem:[#allocation2 + $0x58] sm:$0xff] %v387
    %479 = vst [vmem:[#allocation2 + $0x60] sm:$0xff] %v230
    %480 = vst [vmem:[#allocation2 + $0x68] sm:$0xff] %v232
    %481 = vst [vmem:[#allocation2 + $0x70] sm:$0xff] %v391
    %482 = vst [vmem:[#allocation2 + $0x78] sm:$0xff] %v393
    %483 = vst [vmem:[#allocation2 + $0x80] sm:$0xff] %v236
    %484 = vst [vmem:[#allocation2 + $0x88] sm:$0xff] %v238
    %485 = vst [vmem:[#allocation2 + $0x90] sm:$0xff] %v397
    %486 = vst [vmem:[#allocation2 + $0x98] sm:$0xff] %v399
    %487 = vst [vmem:[#allocation2 + $0xa0] sm:$0xff] %v242
    %488 = vst [vmem:[#allocation2 + $0xa8] sm:$0xff] %v244
    %489 = vst [vmem:[#allocation2 + $0xb0] sm:$0xff] %v403
    %490 = vst [vmem:[#allocation2 + $0xb8] sm:$0xff] %v405
    %491 = vst [vmem:[#allocation2 + $0xc0] sm:$0xff] %v248
    %492 = vst [vmem:[#allocation2 + $0xc8] sm:$0xff] %v250
    %493 = vst [vmem:[#allocation2 + $0xd0] sm:$0xff] %v409
    %494 = vst [vmem:[#allocation2 + $0xd8] sm:$0xff] %v411
    %495 = vst [vmem:[#allocation2 + $0xe0] sm:$0xff] %v254
    %496 = vst [vmem:[#allocation2 + $0xe8] sm:$0xff] %v256
    %497 = vst [vmem:[#allocation2 + $0xf0] sm:$0xff] %v415
    %498 = vst [vmem:[#allocation2 + $0xf8] sm:$0xff] %v417
    %499 = vst [vmem:[#allocation2 + $0x100] sm:$0xff] %v260
    %500 = vst [vmem:[#allocation2 + $0x108] sm:$0xff] %v262
    %501 = vst [vmem:[#allocation2 + $0x110] sm:$0xff] %v421
    %502 = vst [vmem:[#allocation2 + $0x118] sm:$0xff] %v423
    %503 = vst [vmem:[#allocation2 + $0x120] sm:$0xff] %v266
    %504 = vst [vmem:[#allocation2 + $0x128] sm:$0xff] %v268
    %505 = vst [vmem:[#allocation2 + $0x130] sm:$0xff] %v427
    %506 = vst [vmem:[#allocation2 + $0x138] sm:$0xff] %v429
    %507 = vst [vmem:[#allocation2 + $0x140] sm:$0xff] %v272
    %508 = vst [vmem:[#allocation2 + $0x148] sm:$0xff] %v274
    %509 = vst [vmem:[#allocation2 + $0x150] sm:$0xff] %v433
    %510 = vst [vmem:[#allocation2 + $0x158] sm:$0xff] %v435
    %511 = vst [vmem:[#allocation2 + $0x160] sm:$0xff] %v278
    %512 = vst [vmem:[#allocation2 + $0x168] sm:$0xff] %v280
    %513 = vst [vmem:[#allocation2 + $0x170] sm:$0xff] %v439
    %514 = vst [vmem:[#allocation2 + $0x178] sm:$0xff] %v441
    %515 = vst [vmem:[#allocation2 + $0x180] sm:$0xff] %v284
    %516 = vst [vmem:[#allocation2 + $0x188] sm:$0xff] %v286
    %517 = vst [vmem:[#allocation2 + $0x190] sm:$0xff] %v445
    %518 = vst [vmem:[#allocation2 + $0x198] sm:$0xff] %v447
    %519 = vst [vmem:[#allocation2 + $0x1a0] sm:$0xff] %v290
    %520 = vst [vmem:[#allocation2 + $0x1a8] sm:$0xff] %v292
    %521 = vst [vmem:[#allocation2 + $0x1b0] sm:$0xff] %v451
    %522 = vst [vmem:[#allocation2 + $0x1b8] sm:$0xff] %v453
    %523 = vst [vmem:[#allocation2 + $0x1c0] sm:$0xff] %v296
    %524 = vst [vmem:[#allocation2 + $0x1c8] sm:$0xff] %v298
    %525 = vst [vmem:[#allocation2 + $0x1d0] sm:$0xff] %v457
    %526 = vst [vmem:[#allocation2 + $0x1d8] sm:$0xff] %v459
    %527 = vst [vmem:[#allocation2 + $0x1e0] sm:$0xff] %v302
    %528 = vst [vmem:[#allocation2 + $0x1e8] sm:$0xff] %v304
    %529 = vst [vmem:[#allocation2 + $0x1f0] sm:$0xff] %v463
    %530 = vst [vmem:[#allocation2 + $0x1f8] sm:$0xff] %v465
    %v531 = vld [vmem:[%s4] sm:$0xff]
    %v532 = vld [vmem:[%s4 + $0x8] sm:$0xff]
    %v533 = vld [vmem:[%s4 + $0x10] sm:$0xff]
    %v534 = vld [vmem:[%s4 + $0x18] sm:$0xff]
    %v535 = vld [vmem:[%s4 + $0x20] sm:$0xff]
    %v536 = vld [vmem:[%s4 + $0x28] sm:$0xff]
    %v537 = vld [vmem:[%s4 + $0x30] sm:$0xff]
    %v538 = vld [vmem:[%s4 + $0x38] sm:$0xff]
    %v539 = vld [vmem:[%s4 + $0x40] sm:$0xff]
    %v540 = vld [vmem:[%s4 + $0x48] sm:$0xff]
    %v541 = vld [vmem:[%s4 + $0x50] sm:$0xff]
    %v542 = vld [vmem:[%s4 + $0x58] sm:$0xff]
    %v543 = vld [vmem:[%s4 + $0x60] sm:$0xff]
    %v544 = vld [vmem:[%s4 + $0x68] sm:$0xff]
    %v545 = vld [vmem:[%s4 + $0x70] sm:$0xff]
    %v546 = vld [vmem:[%s4 + $0x78] sm:$0xff]
    %v547 = vld [vmem:[%s4 + $0x80] sm:$0xff]
    %v548 = vld [vmem:[%s4 + $0x88] sm:$0xff]
    %v549 = vld [vmem:[%s4 + $0x90] sm:$0xff]
    %v550 = vld [vmem:[%s4 + $0x98] sm:$0xff]
    %v551 = vld [vmem:[%s4 + $0xa0] sm:$0xff]
    %v552 = vld [vmem:[%s4 + $0xa8] sm:$0xff]
    %v553 = vld [vmem:[%s4 + $0xb0] sm:$0xff]
    %v554 = vld [vmem:[%s4 + $0xb8] sm:$0xff]
    %v555 = vld [vmem:[%s4 + $0xc0] sm:$0xff]
    %v556 = vld [vmem:[%s4 + $0xc8] sm:$0xff]
    %v557 = vld [vmem:[%s4 + $0xd0] sm:$0xff]
    %v558 = vld [vmem:[%s4 + $0xd8] sm:$0xff]
    %v559 = vld [vmem:[%s4 + $0xe0] sm:$0xff]
    %v560 = vld [vmem:[%s4 + $0xe8] sm:$0xff]
    %v561 = vld [vmem:[%s4 + $0xf0] sm:$0xff]
    %v562 = vld [vmem:[%s4 + $0xf8] sm:$0xff]
    %v563 = vld [vmem:[%s4 + $0x100] sm:$0xff]
    %v564 = vld [vmem:[%s4 + $0x108] sm:$0xff]
    %v565 = vld [vmem:[%s4 + $0x110] sm:$0xff]
    %v566 = vld [vmem:[%s4 + $0x118] sm:$0xff]
    %v567 = vld [vmem:[%s4 + $0x120] sm:$0xff]
    %v568 = vld [vmem:[%s4 + $0x128] sm:$0xff]
    %v569 = vld [vmem:[%s4 + $0x130] sm:$0xff]
    %v570 = vld [vmem:[%s4 + $0x138] sm:$0xff]
    %v571 = vld [vmem:[%s4 + $0x140] sm:$0xff]
    %v572 = vld [vmem:[%s4 + $0x148] sm:$0xff]
    %v573 = vld [vmem:[%s4 + $0x150] sm:$0xff]
    %v574 = vld [vmem:[%s4 + $0x158] sm:$0xff]
    %v575 = vld [vmem:[%s4 + $0x160] sm:$0xff]
    %v576 = vld [vmem:[%s4 + $0x168] sm:$0xff]
    %v577 = vld [vmem:[%s4 + $0x170] sm:$0xff]
    %v578 = vld [vmem:[%s4 + $0x178] sm:$0xff]
    %v579 = vld [vmem:[%s4 + $0x180] sm:$0xff]
    %v580 = vld [vmem:[%s4 + $0x188] sm:$0xff]
    %v581 = vld [vmem:[%s4 + $0x190] sm:$0xff]
    %v582 = vld [vmem:[%s4 + $0x198] sm:$0xff]
    %v583 = vld [vmem:[%s4 + $0x1a0] sm:$0xff]
    %v584 = vld [vmem:[%s4 + $0x1a8] sm:$0xff]
    %v585 = vld [vmem:[%s4 + $0x1b0] sm:$0xff]
    %v586 = vld [vmem:[%s4 + $0x1b8] sm:$0xff]
    %v587 = vld [vmem:[%s4 + $0x1c0] sm:$0xff]
    %v588 = vld [vmem:[%s4 + $0x1c8] sm:$0xff]
    %v589 = vld [vmem:[%s4 + $0x1d0] sm:$0xff]
    %v590 = vld [vmem:[%s4 + $0x1d8] sm:$0xff]
    %v591 = vld [vmem:[%s4 + $0x1e0] sm:$0xff]
    %v592 = vld [vmem:[%s4 + $0x1e8] sm:$0xff]
    %v593 = vld [vmem:[%s4 + $0x1f0] sm:$0xff]
    %v594 = vld [vmem:[%s4 + $0x1f8] sm:$0xff]
    %v595 = vld [vmem:[%s1] sm:$0xff]
    %v596 = vld [vmem:[%s2] sm:$0xff]
    loop: start=0, step=1, limit=16
    $region46: #{char_rnn_forward.1} parent=1 // loop_pre_header
      _
    $region47: #{char_rnn_forward.1} parent=1 // loop_header
      %s598 = sphi 0, %s602
      %p599 = scmp.ge.s32.totalorder %s598, 16
      %v603 = vphi %v595, %v781
      %v604 = vphi %v596, %v779
    $region48: #{char_rnn_forward.1} parent=1 // loop_header_branch
      %601 = sbr.rel (%p599) target = $region52
    $region49: #{char_rnn_forward.1} parent=1 // loop_body
      %s605 = smul.u32 %s598, 4
      %s606 = smul.addr %s605, 8
      %s607 = scalar_lea.vmem [#allocation2], %s606
      %v608 = vld [vmem:[%s607] sm:$0xff]
      %v609 = vld [vmem:[%s607 + $0x8] sm:$0xff]
      %v610 = vld [vmem:[%s607 + $0x10] sm:$0xff]
      %v611 = vld [vmem:[%s607 + $0x18] sm:$0xff]
      %612 = vmatprep.subr.mxu0 %v592
      %613 = vmatpush1.msra.mxu0 %v591
      %614 = vmatprep.subr.mxu0 %v588
      %615 = vmatpush1.msra.mxu0 %v587
      %616 = vmatprep.subr.mxu0 %v584
      %617 = vmatpush1.msra.mxu0 %v583
      %618 = vmatprep.subr.mxu0 %v580
      %619 = vmatpush1.msra.mxu0 %v579
      %620 = vmatprep.subr.mxu0 %v576
      %621 = vmatpush1.msra.mxu0 %v575
      %622 = vmatprep.subr.mxu0 %v572
      %623 = vmatpush1.msra.mxu0 %v571
      %624 = vmatprep.subr.mxu0 %v568
      %625 = vmatpush1.msra.mxu0 %v567
      %626 = vmatprep.subr.mxu0 %v564
      %627 = vmatpush1.msra.mxu0 %v563
      %628 = vmatprep.subr.mxu0 %v560
      %629 = vmatpush1.msra.mxu0 %v559
      %630 = vmatprep.subr.mxu0 %v556
      %631 = vmatpush1.msra.mxu0 %v555
      %632 = vmatprep.subr.mxu0 %v552
      %633 = vmatpush1.msra.mxu0 %v551
      %634 = vmatprep.subr.mxu0 %v548
      %635 = vmatpush1.msra.mxu0 %v547
      %636 = vmatprep.subr.mxu0 %v544
      %637 = vmatpush1.msra.mxu0 %v543
      %638 = vmatprep.subr.mxu0 %v540
      %639 = vmatpush1.msra.mxu0 %v539
      %640 = vmatprep.subr.mxu0 %v536
      %641 = vmatpush1.msra.mxu0 %v535
      %642 = vmatprep.subr.mxu0 %v532
      %643 = vmatpush1.msra.mxu0 %v531
      %644 = vmatprep.subr.mxu0 0.0
      %645 = vmatpush2.msra.mxu0 0.0
      %646 = vmatprep.subr.mxu0 0.0
      %647 = vmatpush2.msra.mxu0 0.0
      %648 = vmatprep.subr.mxu0 0.0
      %649 = vmatpush2.msra.mxu0 0.0
      %650 = vmatprep.subr.mxu0 0.0
      %651 = vmatpush2.msra.mxu0 0.0
      %652 = vmatprep.subr.mxu0 0.0
      %653 = vmatpush2.msra.mxu0 0.0
      %654 = vmatprep.subr.mxu0 0.0
      %655 = vmatpush2.msra.mxu0 0.0
      %656 = vmatprep.subr.mxu0 0.0
      %657 = vmatpush2.msra.mxu0 0.0
      %658 = vmatprep.subr.mxu0 0.0
      %659 = vmatpush2.msra.mxu0 0.0
      %660 = vmatprep.subr.mxu0 0.0
      %661 = vmatpush2.msra.mxu0 0.0
      %662 = vmatprep.subr.mxu0 0.0
      %663 = vmatpush2.msra.mxu0 0.0
      %664 = vmatprep.subr.mxu0 0.0
      %665 = vmatpush2.msra.mxu0 0.0
      %666 = vmatprep.subr.mxu0 0.0
      %667 = vmatpush2.msra.mxu0 0.0
      %668 = vmatprep.subr.mxu0 0.0
      %669 = vmatpush2.msra.mxu0 0.0
      %670 = vmatprep.subr.mxu0 0.0
      %671 = vmatpush2.msra.mxu0 0.0
      %672 = vmatprep.subr.mxu0 0.0
      %673 = vmatpush2.msra.mxu0 0.0
      %674 = vmatprep.subr.mxu0 0.0
      %675 = vmatpush2.msra.mxu0 0.0
      %676 = vmatprep.mubr.f32.mxu0 0.0
      %677 = vmatmul.mubr.f32.gmra.mxu0 %v603
      %v678 = vpop.f32.mrf.mxu0
      %v679 = vadd.f32 0.0, %v678
      %v680 = vpop.f32.mrf.mxu0
      %v681 = vadd.f32 0.0, %v680
      %682 = vdwg.mxu0
      %683 = vmatprep.subr.mxu0 %v594
      %684 = vmatpush1.msra.mxu0 %v593
      %685 = vmatprep.subr.mxu0 %v590
      %686 = vmatpush1.msra.mxu0 %v589
      %687 = vmatprep.subr.mxu0 %v586
      %688 = vmatpush1.msra.mxu0 %v585
      %689 = vmatprep.subr.mxu0 %v582
      %690 = vmatpush1.msra.mxu0 %v581
      %691 = vmatprep.subr.mxu0 %v578
      %692 = vmatpush1.msra.mxu0 %v577
      %693 = vmatprep.subr.mxu0 %v574
      %694 = vmatpush1.msra.mxu0 %v573
      %695 = vmatprep.subr.mxu0 %v570
      %696 = vmatpush1.msra.mxu0 %v569
      %697 = vmatprep.subr.mxu0 %v566
      %698 = vmatpush1.msra.mxu0 %v565
      %699 = vmatprep.subr.mxu0 %v562
      %700 = vmatpush1.msra.mxu0 %v561
      %701 = vmatprep.subr.mxu0 %v558
      %702 = vmatpush1.msra.mxu0 %v557
      %703 = vmatprep.subr.mxu0 %v554
      %704 = vmatpush1.msra.mxu0 %v553
      %705 = vmatprep.subr.mxu0 %v550
      %706 = vmatpush1.msra.mxu0 %v549
      %707 = vmatprep.subr.mxu0 %v546
      %708 = vmatpush1.msra.mxu0 %v545
      %709 = vmatprep.subr.mxu0 %v542
      %710 = vmatpush1.msra.mxu0 %v541
      %711 = vmatprep.subr.mxu0 %v538
      %712 = vmatpush1.msra.mxu0 %v537
      %713 = vmatprep.subr.mxu0 %v534
      %714 = vmatpush1.msra.mxu0 %v533
      %715 = vmatprep.subr.mxu0 0.0
      %716 = vmatpush2.msra.mxu0 0.0
      %717 = vmatprep.subr.mxu0 0.0
      %718 = vmatpush2.msra.mxu0 0.0
      %719 = vmatprep.subr.mxu0 0.0
      %720 = vmatpush2.msra.mxu0 0.0
      %721 = vmatprep.subr.mxu0 0.0
      %722 = vmatpush2.msra.mxu0 0.0
      %723 = vmatprep.subr.mxu0 0.0
      %724 = vmatpush2.msra.mxu0 0.0
      %725 = vmatprep.subr.mxu0 0.0
      %726 = vmatpush2.msra.mxu0 0.0
      %727 = vmatprep.subr.mxu0 0.0
      %728 = vmatpush2.msra.mxu0 0.0
      %729 = vmatprep.subr.mxu0 0.0
      %730 = vmatpush2.msra.mxu0 0.0
      %731 = vmatprep.subr.mxu0 0.0
      %732 = vmatpush2.msra.mxu0 0.0
      %733 = vmatprep.subr.mxu0 0.0
      %734 = vmatpush2.msra.mxu0 0.0
      %735 = vmatprep.subr.mxu0 0.0
      %736 = vmatpush2.msra.mxu0 0.0
      %737 = vmatprep.subr.mxu0 0.0
      %738 = vmatpush2.msra.mxu0 0.0
      %739 = vmatprep.subr.mxu0 0.0
      %740 = vmatpush2.msra.mxu0 0.0
      %741 = vmatprep.subr.mxu0 0.0
      %742 = vmatpush2.msra.mxu0 0.0
      %743 = vmatprep.subr.mxu0 0.0
      %744 = vmatpush2.msra.mxu0 0.0
      %745 = vmatprep.subr.mxu0 0.0
      %746 = vmatpush2.msra.mxu0 0.0
      %747 = vmatprep.mubr.f32.mxu0 0.0
      %748 = vmatmul.mubr.f32.gmra.mxu0 %v603
      %v749 = vpop.f32.mrf.mxu0
      %v750 = vadd.f32 0.0, %v749
      %v751 = vpop.f32.mrf.mxu0
      %v752 = vadd.f32 0.0, %v751
      %753 = vdwg.mxu0
      %v754 = vadd.f32 %v608, %v679
      %v755 = vadd.f32 %v609, %v681
      %v756 = vadd.f32 %v610, %v750
      %v757 = vadd.f32 %v611, %v752
      %v758 = vxor.u32 %v754, 2147483648
      %v759 = vmul.f32 %v758, 1.442695
      %v760 = vpow.pop %v759
      %v761 = vadd.f32 %v760, 1.0
      %v762 = vrcp.pop %v761
      %v763 = vmul.f32 1.0, %v762
      %v764 = vxor.u32 %v755, 2147483648
      %v765 = vmul.f32 %v764, 1.442695
      %v766 = vpow.pop %v765
      %v767 = vadd.f32 %v766, 1.0
      %v768 = vrcp.pop %v767
      %v769 = vmul.f32 1.0, %v768
      %v770 = vtanh.pop %v756
      %v771 = vxor.u32 %v757, 2147483648
      %v772 = vmul.f32 %v771, 1.442695
      %v773 = vpow.pop %v772
      %v774 = vadd.f32 %v773, 1.0
      %v775 = vrcp.pop %v774
      %v776 = vmul.f32 1.0, %v775
      %v777 = vmul.f32 %v769, %v604
      %v778 = vmul.f32 %v763, %v770
      %v779 = vadd.f32 %v777, %v778
      %v780 = vtanh.pop %v779
      %v781 = vmul.f32 %v776, %v780
      %s782 = smul.u32 %s598, 8
      %s783 = scalar_lea.vmem [#allocation3], %s782
      %784 = vst [vmem:[%s783] sm:$0xff] %v781
    $region50: #{char_rnn_forward.1} parent=1 // loop_footer
      %s602 = sadd.s32 1, %s598
    $region51: #{char_rnn_forward.1} parent=1 // loop_footer_branch
      %597 = sbr.rel target = $region47
    $region52: #{char_rnn_forward.1} parent=1 // loop_exit
      _
    %785 = vst [vmem:[#allocation4] sm:$0xff] %v603
    %786 = vst [vmem:[#allocation6] sm:$0xff] %v604
    %v787 = vld [vmem:[#allocation3] sm:$0xff]
    %v788 = vld [vmem:[#allocation3 + $0x8] sm:$0xff]
    %v789 = vld [vmem:[#allocation3 + $0x10] sm:$0xff]
    %v790 = vld [vmem:[#allocation3 + $0x18] sm:$0xff]
    %v791 = vld [vmem:[#allocation3 + $0x20] sm:$0xff]
    %v792 = vld [vmem:[#allocation3 + $0x28] sm:$0xff]
    %v793 = vld [vmem:[#allocation3 + $0x30] sm:$0xff]
    %v794 = vld [vmem:[#allocation3 + $0x38] sm:$0xff]
    %v795 = vld [vmem:[#allocation3 + $0x40] sm:$0xff]
    %v796 = vld [vmem:[#allocation3 + $0x48] sm:$0xff]
    %v797 = vld [vmem:[#allocation3 + $0x50] sm:$0xff]
    %v798 = vld [vmem:[#allocation3 + $0x58] sm:$0xff]
    %v799 = vld [vmem:[#allocation3 + $0x60] sm:$0xff]
    %v800 = vld [vmem:[#allocation3 + $0x68] sm:$0xff]
    %v801 = vld [vmem:[#allocation3 + $0x70] sm:$0xff]
    %v802 = vld [vmem:[#allocation3 + $0x78] sm:$0xff]
    %v803 = vld [vmem:[%s6] sm:$0xff]
    %v804 = vld [vmem:[%s6 + $0x8] sm:$0xff]
    %v805 = vld [vmem:[%s6 + $0x10] sm:$0xff]
    %v806 = vld [vmem:[%s6 + $0x18] sm:$0xff]
    %v807 = vld [vmem:[%s6 + $0x20] sm:$0xff]
    %v808 = vld [vmem:[%s6 + $0x28] sm:$0xff]
    %v809 = vld [vmem:[%s6 + $0x30] sm:$0xff]
    %v810 = vld [vmem:[%s6 + $0x38] sm:$0xff]
    %v811 = vld [vmem:[%s6 + $0x40] sm:$0xff]
    %v812 = vld [vmem:[%s6 + $0x48] sm:$0xff]
    %v813 = vld [vmem:[%s6 + $0x50] sm:$0xff]
    %v814 = vld [vmem:[%s6 + $0x58] sm:$0xff]
    %v815 = vld [vmem:[%s6 + $0x60] sm:$0xff]
    %v816 = vld [vmem:[%s6 + $0x68] sm:$0xff]
    %v817 = vld [vmem:[%s6 + $0x70] sm:$0xff]
    %v818 = vld [vmem:[%s6 + $0x78] sm:$0xff]
    %v819 = vld [vmem:[%s6 + $0x80] sm:$0xff]
    %v820 = vld [vmem:[%s6 + $0x88] sm:$0xff]
    %v821 = vld [vmem:[%s6 + $0x90] sm:$0xff]
    %v822 = vld [vmem:[%s6 + $0x98] sm:$0xff]
    %v823 = vld [vmem:[%s6 + $0xa0] sm:$0xff]
    %v824 = vld [vmem:[%s6 + $0xa8] sm:$0xff]
    %v825 = vld [vmem:[%s6 + $0xb0] sm:$0xff]
    %v826 = vld [vmem:[%s6 + $0xb8] sm:$0xff]
    %v827 = vld [vmem:[%s6 + $0xc0] sm:$0xff]
    %v828 = vld [vmem:[%s6 + $0xc8] sm:$0xff]
    %v829 = vld [vmem:[%s6 + $0xd0] sm:$0xff]
    %v830 = vld [vmem:[%s6 + $0xd8] sm:$0xff]
    %v831 = vld [vmem:[%s6 + $0xe0] sm:$0xff]
    %v832 = vld [vmem:[%s6 + $0xe8] sm:$0xff]
    %v833 = vld [vmem:[%s6 + $0xf0] sm:$0xff]
    %v834 = vld [vmem:[%s6 + $0xf8] sm:$0xff]
    %v835 = vld [vmem:[%s6 + $0x100] sm:$0xff]
    %v836 = vld [vmem:[%s6 + $0x108] sm:$0xff]
    %v837 = vld [vmem:[%s6 + $0x110] sm:$0xff]
    %v838 = vld [vmem:[%s6 + $0x118] sm:$0xff]
    %v839 = vld [vmem:[%s6 + $0x120] sm:$0xff]
    %v840 = vld [vmem:[%s6 + $0x128] sm:$0xff]
    %v841 = vld [vmem:[%s6 + $0x130] sm:$0xff]
    %v842 = vld [vmem:[%s6 + $0x138] sm:$0xff]
    %v843 = vld [vmem:[%s6 + $0x140] sm:$0xff]
    %v844 = vld [vmem:[%s6 + $0x148] sm:$0xff]
    %v845 = vld [vmem:[%s6 + $0x150] sm:$0xff]
    %v846 = vld [vmem:[%s6 + $0x158] sm:$0xff]
    %v847 = vld [vmem:[%s6 + $0x160] sm:$0xff]
    %v848 = vld [vmem:[%s6 + $0x168] sm:$0xff]
    %v849 = vld [vmem:[%s6 + $0x170] sm:$0xff]
    %v850 = vld [vmem:[%s6 + $0x178] sm:$0xff]
    %v851 = vld [vmem:[%s6 + $0x180] sm:$0xff]
    %v852 = vld [vmem:[%s6 + $0x188] sm:$0xff]
    %v853 = vld [vmem:[%s6 + $0x190] sm:$0xff]
    %v854 = vld [vmem:[%s6 + $0x198] sm:$0xff]
    %v855 = vld [vmem:[%s6 + $0x1a0] sm:$0xff]
    %v856 = vld [vmem:[%s6 + $0x1a8] sm:$0xff]
    %v857 = vld [vmem:[%s6 + $0x1b0] sm:$0xff]
    %v858 = vld [vmem:[%s6 + $0x1b8] sm:$0xff]
    %v859 = vld [vmem:[%s6 + $0x1c0] sm:$0xff]
    %v860 = vld [vmem:[%s6 + $0x1c8] sm:$0xff]
    %v861 = vld [vmem:[%s6 + $0x1d0] sm:$0xff]
    %v862 = vld [vmem:[%s6 + $0x1d8] sm:$0xff]
    %v863 = vld [vmem:[%s6 + $0x1e0] sm:$0xff]
    %v864 = vld [vmem:[%s6 + $0x1e8] sm:$0xff]
    %v865 = vld [vmem:[%s6 + $0x1f0] sm:$0xff]
    %v866 = vld [vmem:[%s6 + $0x1f8] sm:$0xff]
    %v867 = vld [vmem:[%s8] sm:$0xf]
    %v869 = vlaneseq
    %v870 = vshrl.u32 %v869, 7
    %v871 = vsub.s32 0, %v870
    %v872 = vrot.slane %v867, %v871
    %v873 = vlaneseq
    %v874 = vshrl.u32 %v873, 7
    %v875 = vsub.s32 1, %v874
    %v876 = vrot.slane %v867, %v875
    %v877 = vlaneseq
    %v878 = vshrl.u32 %v877, 7
    %v879 = vsub.s32 2, %v878
    %v880 = vrot.slane %v867, %v879
    %v881 = vlaneseq
    %v882 = vshrl.u32 %v881, 7
    %v883 = vsub.s32 3, %v882
    %v884 = vrot.slane %v867, %v883
    %889 = vmatprep.subr.mxu0 %v864
    %890 = vmatpush1.msra.mxu0 %v863
    %891 = vmatprep.subr.mxu0 %v860
    %892 = vmatpush1.msra.mxu0 %v859
    %893 = vmatprep.subr.mxu0 %v856
    %894 = vmatpush1.msra.mxu0 %v855
    %895 = vmatprep.subr.mxu0 %v852
    %896 = vmatpush1.msra.mxu0 %v851
    %897 = vmatprep.subr.mxu0 %v848
    %898 = vmatpush1.msra.mxu0 %v847
    %899 = vmatprep.subr.mxu0 %v844
    %900 = vmatpush1.msra.mxu0 %v843
    %901 = vmatprep.subr.mxu0 %v840
    %902 = vmatpush1.msra.mxu0 %v839
    %903 = vmatprep.subr.mxu0 %v836
    %904 = vmatpush1.msra.mxu0 %v835
    %905 = vmatprep.subr.mxu0 %v832
    %906 = vmatpush1.msra.mxu0 %v831
    %907 = vmatprep.subr.mxu0 %v828
    %908 = vmatpush1.msra.mxu0 %v827
    %909 = vmatprep.subr.mxu0 %v824
    %910 = vmatpush1.msra.mxu0 %v823
    %911 = vmatprep.subr.mxu0 %v820
    %912 = vmatpush1.msra.mxu0 %v819
    %913 = vmatprep.subr.mxu0 %v816
    %914 = vmatpush1.msra.mxu0 %v815
    %915 = vmatprep.subr.mxu0 %v812
    %916 = vmatpush1.msra.mxu0 %v811
    %917 = vmatprep.subr.mxu0 %v808
    %918 = vmatpush1.msra.mxu0 %v807
    %919 = vmatprep.subr.mxu0 %v804
    %920 = vmatpush1.msra.mxu0 %v803
    %921 = vmatprep.subr.mxu0 0.0
    %922 = vmatpush2.msra.mxu0 0.0
    %923 = vmatprep.subr.mxu0 0.0
    %924 = vmatpush2.msra.mxu0 0.0
    %925 = vmatprep.subr.mxu0 0.0
    %926 = vmatpush2.msra.mxu0 0.0
    %927 = vmatprep.subr.mxu0 0.0
    %928 = vmatpush2.msra.mxu0 0.0
    %929 = vmatprep.subr.mxu0 0.0
    %930 = vmatpush2.msra.mxu0 0.0
    %931 = vmatprep.subr.mxu0 0.0
    %932 = vmatpush2.msra.mxu0 0.0
    %933 = vmatprep.subr.mxu0 0.0
    %934 = vmatpush2.msra.mxu0 0.0
    %935 = vmatprep.subr.mxu0 0.0
    %936 = vmatpush2.msra.mxu0 0.0
    %937 = vmatprep.subr.mxu0 0.0
    %938 = vmatpush2.msra.mxu0 0.0
    %939 = vmatprep.subr.mxu0 0.0
    %940 = vmatpush2.msra.mxu0 0.0
    %941 = vmatprep.subr.mxu0 0.0
    %942 = vmatpush2.msra.mxu0 0.0
    %943 = vmatprep.subr.mxu0 0.0
    %944 = vmatpush2.msra.mxu0 0.0
    %945 = vmatprep.subr.mxu0 0.0
    %946 = vmatpush2.msra.mxu0 0.0
    %947 = vmatprep.subr.mxu0 0.0
    %948 = vmatpush2.msra.mxu0 0.0
    %949 = vmatprep.subr.mxu0 0.0
    %950 = vmatpush2.msra.mxu0 0.0
    %951 = vmatprep.subr.mxu0 0.0
    %952 = vmatpush2.msra.mxu0 0.0
    %953 = vmatprep.mubr.f32.mxu0 0.0
    %954 = vmatmul.mubr.f32.gmra.mxu0 %v787
    %v955 = vpop.f32.mrf.mxu0
    %v956 = vadd.f32 %v872, %v955
    %v957 = vpop.f32.mrf.mxu0
    %v958 = vadd.f32 %v876, %v957
    %959 = vmatprep.mubr.f32.mxu0 0.0
    %960 = vmatmul.mubr.f32.gmra.mxu0 %v788
    %v961 = vpop.f32.mrf.mxu0
    %v962 = vadd.f32 %v872, %v961
    %v963 = vpop.f32.mrf.mxu0
    %v964 = vadd.f32 %v876, %v963
    %965 = vmatprep.mubr.f32.mxu0 0.0
    %966 = vmatmul.mubr.f32.gmra.mxu0 %v789
    %v967 = vpop.f32.mrf.mxu0
    %v968 = vadd.f32 %v872, %v967
    %v969 = vpop.f32.mrf.mxu0
    %v970 = vadd.f32 %v876, %v969
    %971 = vmatprep.mubr.f32.mxu0 0.0
    %972 = vmatmul.mubr.f32.gmra.mxu0 %v790
    %v973 = vpop.f32.mrf.mxu0
    %v974 = vadd.f32 %v872, %v973
    %v975 = vpop.f32.mrf.mxu0
    %v976 = vadd.f32 %v876, %v975
    %977 = vmatprep.mubr.f32.mxu0 0.0
    %978 = vmatmul.mubr.f32.gmra.mxu0 %v791
    %v979 = vpop.f32.mrf.mxu0
    %v980 = vadd.f32 %v872, %v979
    %v981 = vpop.f32.mrf.mxu0
    %v982 = vadd.f32 %v876, %v981
    %983 = vmatprep.mubr.f32.mxu0 0.0
    %984 = vmatmul.mubr.f32.gmra.mxu0 %v792
    %v985 = vpop.f32.mrf.mxu0
    %v986 = vadd.f32 %v872, %v985
    %v987 = vpop.f32.mrf.mxu0
    %v988 = vadd.f32 %v876, %v987
    %989 = vmatprep.mubr.f32.mxu0 0.0
    %990 = vmatmul.mubr.f32.gmra.mxu0 %v793
    %v991 = vpop.f32.mrf.mxu0
    %v992 = vadd.f32 %v872, %v991
    %v993 = vpop.f32.mrf.mxu0
    %v994 = vadd.f32 %v876, %v993
    %995 = vmatprep.mubr.f32.mxu0 0.0
    %996 = vmatmul.mubr.f32.gmra.mxu0 %v794
    %v997 = vpop.f32.mrf.mxu0
    %v998 = vadd.f32 %v872, %v997
    %v999 = vpop.f32.mrf.mxu0
    %v1000 = vadd.f32 %v876, %v999
    %1001 = vmatprep.mubr.f32.mxu0 0.0
    %1002 = vmatmul.mubr.f32.gmra.mxu0 %v795
    %v1003 = vpop.f32.mrf.mxu0
    %v1004 = vadd.f32 %v872, %v1003
    %v1005 = vpop.f32.mrf.mxu0
    %v1006 = vadd.f32 %v876, %v1005
    %1007 = vmatprep.mubr.f32.mxu0 0.0
    %1008 = vmatmul.mubr.f32.gmra.mxu0 %v796
    %v1009 = vpop.f32.mrf.mxu0
    %v1010 = vadd.f32 %v872, %v1009
    %v1011 = vpop.f32.mrf.mxu0
    %v1012 = vadd.f32 %v876, %v1011
    %1013 = vmatprep.mubr.f32.mxu0 0.0
    %1014 = vmatmul.mubr.f32.gmra.mxu0 %v797
    %v1015 = vpop.f32.mrf.mxu0
    %v1016 = vadd.f32 %v872, %v1015
    %v1017 = vpop.f32.mrf.mxu0
    %v1018 = vadd.f32 %v876, %v1017
    %1019 = vmatprep.mubr.f32.mxu0 0.0
    %1020 = vmatmul.mubr.f32.gmra.mxu0 %v798
    %v1021 = vpop.f32.mrf.mxu0
    %v1022 = vadd.f32 %v872, %v1021
    %v1023 = vpop.f32.mrf.mxu0
    %v1024 = vadd.f32 %v876, %v1023
    %1025 = vmatprep.mubr.f32.mxu0 0.0
    %1026 = vmatmul.mubr.f32.gmra.mxu0 %v799
    %v1027 = vpop.f32.mrf.mxu0
    %v1028 = vadd.f32 %v872, %v1027
    %v1029 = vpop.f32.mrf.mxu0
    %v1030 = vadd.f32 %v876, %v1029
    %1031 = vmatprep.mubr.f32.mxu0 0.0
    %1032 = vmatmul.mubr.f32.gmra.mxu0 %v800
    %v1033 = vpop.f32.mrf.mxu0
    %v1034 = vadd.f32 %v872, %v1033
    %v1035 = vpop.f32.mrf.mxu0
    %v1036 = vadd.f32 %v876, %v1035
    %1037 = vmatprep.mubr.f32.mxu0 0.0
    %1038 = vmatmul.mubr.f32.gmra.mxu0 %v801
    %v1039 = vpop.f32.mrf.mxu0
    %v1040 = vadd.f32 %v872, %v1039
    %v1041 = vpop.f32.mrf.mxu0
    %v1042 = vadd.f32 %v876, %v1041
    %1043 = vmatprep.mubr.f32.mxu0 0.0
    %1044 = vmatmul.mubr.f32.gmra.mxu0 %v802
    %v1045 = vpop.f32.mrf.mxu0
    %v1046 = vadd.f32 %v872, %v1045
    %v1047 = vpop.f32.mrf.mxu0
    %v1048 = vadd.f32 %v876, %v1047
    %1049 = vdwg.mxu0
    %1050 = vmatprep.subr.mxu0 %v866
    %1051 = vmatpush1.msra.mxu0 %v865
    %1052 = vmatprep.subr.mxu0 %v862
    %1053 = vmatpush1.msra.mxu0 %v861
    %1054 = vmatprep.subr.mxu0 %v858
    %1055 = vmatpush1.msra.mxu0 %v857
    %1056 = vmatprep.subr.mxu0 %v854
    %1057 = vmatpush1.msra.mxu0 %v853
    %1058 = vmatprep.subr.mxu0 %v850
    %1059 = vmatpush1.msra.mxu0 %v849
    %1060 = vmatprep.subr.mxu0 %v846
    %1061 = vmatpush1.msra.mxu0 %v845
    %1062 = vmatprep.subr.mxu0 %v842
    %1063 = vmatpush1.msra.mxu0 %v841
    %1064 = vmatprep.subr.mxu0 %v838
    %1065 = vmatpush1.msra.mxu0 %v837
    %1066 = vmatprep.subr.mxu0 %v834
    %1067 = vmatpush1.msra.mxu0 %v833
    %1068 = vmatprep.subr.mxu0 %v830
    %1069 = vmatpush1.msra.mxu0 %v829
    %1070 = vmatprep.subr.mxu0 %v826
    %1071 = vmatpush1.msra.mxu0 %v825
    %1072 = vmatprep.subr.mxu0 %v822
    %1073 = vmatpush1.msra.mxu0 %v821
    %1074 = vmatprep.subr.mxu0 %v818
    %1075 = vmatpush1.msra.mxu0 %v817
    %1076 = vmatprep.subr.mxu0 %v814
    %1077 = vmatpush1.msra.mxu0 %v813
    %1078 = vmatprep.subr.mxu0 %v810
    %1079 = vmatpush1.msra.mxu0 %v809
    %1080 = vmatprep.subr.mxu0 %v806
    %1081 = vmatpush1.msra.mxu0 %v805
    %1082 = vmatprep.subr.mxu0 0.0
    %1083 = vmatpush2.msra.mxu0 0.0
    %1084 = vmatprep.subr.mxu0 0.0
    %1085 = vmatpush2.msra.mxu0 0.0
    %1086 = vmatprep.subr.mxu0 0.0
    %1087 = vmatpush2.msra.mxu0 0.0
    %1088 = vmatprep.subr.mxu0 0.0
    %1089 = vmatpush2.msra.mxu0 0.0
    %1090 = vmatprep.subr.mxu0 0.0
    %1091 = vmatpush2.msra.mxu0 0.0
    %1092 = vmatprep.subr.mxu0 0.0
    %1093 = vmatpush2.msra.mxu0 0.0
    %1094 = vmatprep.subr.mxu0 0.0
    %1095 = vmatpush2.msra.mxu0 0.0
    %1096 = vmatprep.subr.mxu0 0.0
    %1097 = vmatpush2.msra.mxu0 0.0
    %1098 = vmatprep.subr.mxu0 0.0
    %1099 = vmatpush2.msra.mxu0 0.0
    %1100 = vmatprep.subr.mxu0 0.0
    %1101 = vmatpush2.msra.mxu0 0.0
    %1102 = vmatprep.subr.mxu0 0.0
    %1103 = vmatpush2.msra.mxu0 0.0
    %1104 = vmatprep.subr.mxu0 0.0
    %1105 = vmatpush2.msra.mxu0 0.0
    %1106 = vmatprep.subr.mxu0 0.0
    %1107 = vmatpush2.msra.mxu0 0.0
    %1108 = vmatprep.subr.mxu0 0.0
    %1109 = vmatpush2.msra.mxu0 0.0
    %1110 = vmatprep.subr.mxu0 0.0
    %1111 = vmatpush2.msra.mxu0 0.0
    %1112 = vmatprep.subr.mxu0 0.0
    %1113 = vmatpush2.msra.mxu0 0.0
    %1114 = vmatprep.mubr.f32.mxu0 0.0
    %1115 = vmatmul.mubr.f32.gmra.mxu0 %v787
    %v1116 = vpop.f32.mrf.mxu0
    %v1117 = vadd.f32 %v880, %v1116
    %v1118 = vpop.f32.mrf.mxu0
    %v1119 = vadd.f32 %v884, %v1118
    %1120 = vmatprep.mubr.f32.mxu0 0.0
    %1121 = vmatmul.mubr.f32.gmra.mxu0 %v788
    %v1122 = vpop.f32.mrf.mxu0
    %v1123 = vadd.f32 %v880, %v1122
    %v1124 = vpop.f32.mrf.mxu0
    %v1125 = vadd.f32 %v884, %v1124
    %1126 = vmatprep.mubr.f32.mxu0 0.0
    %1127 = vmatmul.mubr.f32.gmra.mxu0 %v789
    %v1128 = vpop.f32.mrf.mxu0
    %v1129 = vadd.f32 %v880, %v1128
    %v1130 = vpop.f32.mrf.mxu0
    %v1131 = vadd.f32 %v884, %v1130
    %1132 = vmatprep.mubr.f32.mxu0 0.0
    %1133 = vmatmul.mubr.f32.gmra.mxu0 %v790
    %v1134 = vpop.f32.mrf.mxu0
    %v1135 = vadd.f32 %v880, %v1134
    %v1136 = vpop.f32.mrf.mxu0
    %v1137 = vadd.f32 %v884, %v1136
    %1138 = vmatprep.mubr.f32.mxu0 0.0
    %1139 = vmatmul.mubr.f32.gmra.mxu0 %v791
    %v1140 = vpop.f32.mrf.mxu0
    %v1141 = vadd.f32 %v880, %v1140
    %v1142 = vpop.f32.mrf.mxu0
    %v1143 = vadd.f32 %v884, %v1142
    %1144 = vmatprep.mubr.f32.mxu0 0.0
    %1145 = vmatmul.mubr.f32.gmra.mxu0 %v792
    %v1146 = vpop.f32.mrf.mxu0
    %v1147 = vadd.f32 %v880, %v1146
    %v1148 = vpop.f32.mrf.mxu0
    %v1149 = vadd.f32 %v884, %v1148
    %1150 = vmatprep.mubr.f32.mxu0 0.0
    %1151 = vmatmul.mubr.f32.gmra.mxu0 %v793
    %v1152 = vpop.f32.mrf.mxu0
    %v1153 = vadd.f32 %v880, %v1152
    %v1154 = vpop.f32.mrf.mxu0
    %v1155 = vadd.f32 %v884, %v1154
    %1156 = vmatprep.mubr.f32.mxu0 0.0
    %1157 = vmatmul.mubr.f32.gmra.mxu0 %v794
    %v1158 = vpop.f32.mrf.mxu0
    %v1159 = vadd.f32 %v880, %v1158
    %v1160 = vpop.f32.mrf.mxu0
    %v1161 = vadd.f32 %v884, %v1160
    %1162 = vmatprep.mubr.f32.mxu0 0.0
    %1163 = vmatmul.mubr.f32.gmra.mxu0 %v795
    %v1164 = vpop.f32.mrf.mxu0
    %v1165 = vadd.f32 %v880, %v1164
    %v1166 = vpop.f32.mrf.mxu0
    %v1167 = vadd.f32 %v884, %v1166
    %1168 = vmatprep.mubr.f32.mxu0 0.0
    %1169 = vmatmul.mubr.f32.gmra.mxu0 %v796
    %v1170 = vpop.f32.mrf.mxu0
    %v1171 = vadd.f32 %v880, %v1170
    %v1172 = vpop.f32.mrf.mxu0
    %v1173 = vadd.f32 %v884, %v1172
    %1174 = vmatprep.mubr.f32.mxu0 0.0
    %1175 = vmatmul.mubr.f32.gmra.mxu0 %v797
    %v1176 = vpop.f32.mrf.mxu0
    %v1177 = vadd.f32 %v880, %v1176
    %v1178 = vpop.f32.mrf.mxu0
    %v1179 = vadd.f32 %v884, %v1178
    %1180 = vmatprep.mubr.f32.mxu0 0.0
    %1181 = vmatmul.mubr.f32.gmra.mxu0 %v798
    %v1182 = vpop.f32.mrf.mxu0
    %v1183 = vadd.f32 %v880, %v1182
    %v1184 = vpop.f32.mrf.mxu0
    %v1185 = vadd.f32 %v884, %v1184
    %1186 = vmatprep.mubr.f32.mxu0 0.0
    %1187 = vmatmul.mubr.f32.gmra.mxu0 %v799
    %v1188 = vpop.f32.mrf.mxu0
    %v1189 = vadd.f32 %v880, %v1188
    %v1190 = vpop.f32.mrf.mxu0
    %v1191 = vadd.f32 %v884, %v1190
    %1192 = vmatprep.mubr.f32.mxu0 0.0
    %1193 = vmatmul.mubr.f32.gmra.mxu0 %v800
    %v1194 = vpop.f32.mrf.mxu0
    %v1195 = vadd.f32 %v880, %v1194
    %v1196 = vpop.f32.mrf.mxu0
    %v1197 = vadd.f32 %v884, %v1196
    %1198 = vmatprep.mubr.f32.mxu0 0.0
    %1199 = vmatmul.mubr.f32.gmra.mxu0 %v801
    %v1200 = vpop.f32.mrf.mxu0
    %v1201 = vadd.f32 %v880, %v1200
    %v1202 = vpop.f32.mrf.mxu0
    %v1203 = vadd.f32 %v884, %v1202
    %1204 = vmatprep.mubr.f32.mxu0 0.0
    %1205 = vmatmul.mubr.f32.gmra.mxu0 %v802
    %v1206 = vpop.f32.mrf.mxu0
    %v1207 = vadd.f32 %v880, %v1206
    %v1208 = vpop.f32.mrf.mxu0
    %v1209 = vadd.f32 %v884, %v1208
    %1210 = vdwg.mxu0
    %1211 = vst [vmem:[#allocation2] sm:$0xff] %v956
    %1212 = vst [vmem:[#allocation2 + $0x8] sm:$0xff] %v958
    %1213 = vst [vmem:[#allocation2 + $0x10] sm:$0xff] %v1117
    %1214 = vst [vmem:[#allocation2 + $0x18] sm:$0xff] %v1119
    %1215 = vst [vmem:[#allocation2 + $0x20] sm:$0xff] %v962
    %1216 = vst [vmem:[#allocation2 + $0x28] sm:$0xff] %v964
    %1217 = vst [vmem:[#allocation2 + $0x30] sm:$0xff] %v1123
    %1218 = vst [vmem:[#allocation2 + $0x38] sm:$0xff] %v1125
    %1219 = vst [vmem:[#allocation2 + $0x40] sm:$0xff] %v968
    %1220 = vst [vmem:[#allocation2 + $0x48] sm:$0xff] %v970
    %1221 = vst [vmem:[#allocation2 + $0x50] sm:$0xff] %v1129
    %1222 = vst [vmem:[#allocation2 + $0x58] sm:$0xff] %v1131
    %1223 = vst [vmem:[#allocation2 + $0x60] sm:$0xff] %v974
    %1224 = vst [vmem:[#allocation2 + $0x68] sm:$0xff] %v976
    %1225 = vst [vmem:[#allocation2 + $0x70] sm:$0xff] %v1135
    %1226 = vst [vmem:[#allocation2 + $0x78] sm:$0xff] %v1137
    %1227 = vst [vmem:[#allocation2 + $0x80] sm:$0xff] %v980
    %1228 = vst [vmem:[#allocation2 + $0x88] sm:$0xff] %v982
    %1229 = vst [vmem:[#allocation2 + $0x90] sm:$0xff] %v1141
    %1230 = vst [vmem:[#allocation2 + $0x98] sm:$0xff] %v1143
    %1231 = vst [vmem:[#allocation2 + $0xa0] sm:$0xff] %v986
    %1232 = vst [vmem:[#allocation2 + $0xa8] sm:$0xff] %v988
    %1233 = vst [vmem:[#allocation2 + $0xb0] sm:$0xff] %v1147
    %1234 = vst [vmem:[#allocation2 + $0xb8] sm:$0xff] %v1149
    %1235 = vst [vmem:[#allocation2 + $0xc0] sm:$0xff] %v992
    %1236 = vst [vmem:[#allocation2 + $0xc8] sm:$0xff] %v994
    %1237 = vst [vmem:[#allocation2 + $0xd0] sm:$0xff] %v1153
    %1238 = vst [vmem:[#allocation2 + $0xd8] sm:$0xff] %v1155
    %1239 = vst [vmem:[#allocation2 + $0xe0] sm:$0xff] %v998
    %1240 = vst [vmem:[#allocation2 + $0xe8] sm:$0xff] %v1000
    %1241 = vst [vmem:[#allocation2 + $0xf0] sm:$0xff] %v1159
    %1242 = vst [vmem:[#allocation2 + $0xf8] sm:$0xff] %v1161
    %1243 = vst [vmem:[#allocation2 + $0x100] sm:$0xff] %v1004
    %1244 = vst [vmem:[#allocation2 + $0x108] sm:$0xff] %v1006
    %1245 = vst [vmem:[#allocation2 + $0x110] sm:$0xff] %v1165
    %1246 = vst [vmem:[#allocation2 + $0x118] sm:$0xff] %v1167
    %1247 = vst [vmem:[#allocation2 + $0x120] sm:$0xff] %v1010
    %1248 = vst [vmem:[#allocation2 + $0x128] sm:$0xff] %v1012
    %1249 = vst [vmem:[#allocation2 + $0x130] sm:$0xff] %v1171
    %1250 = vst [vmem:[#allocation2 + $0x138] sm:$0xff] %v1173
    %1251 = vst [vmem:[#allocation2 + $0x140] sm:$0xff] %v1016
    %1252 = vst [vmem:[#allocation2 + $0x148] sm:$0xff] %v1018
    %1253 = vst [vmem:[#allocation2 + $0x150] sm:$0xff] %v1177
    %1254 = vst [vmem:[#allocation2 + $0x158] sm:$0xff] %v1179
    %1255 = vst [vmem:[#allocation2 + $0x160] sm:$0xff] %v1022
    %1256 = vst [vmem:[#allocation2 + $0x168] sm:$0xff] %v1024
    %1257 = vst [vmem:[#allocation2 + $0x170] sm:$0xff] %v1183
    %1258 = vst [vmem:[#allocation2 + $0x178] sm:$0xff] %v1185
    %1259 = vst [vmem:[#allocation2 + $0x180] sm:$0xff] %v1028
    %1260 = vst [vmem:[#allocation2 + $0x188] sm:$0xff] %v1030
    %1261 = vst [vmem:[#allocation2 + $0x190] sm:$0xff] %v1189
    %1262 = vst [vmem:[#allocation2 + $0x198] sm:$0xff] %v1191
    %1263 = vst [vmem:[#allocation2 + $0x1a0] sm:$0xff] %v1034
    %1264 = vst [vmem:[#allocation2 + $0x1a8] sm:$0xff] %v1036
    %1265 = vst [vmem:[#allocation2 + $0x1b0] sm:$0xff] %v1195
    %1266 = vst [vmem:[#allocation2 + $0x1b8] sm:$0xff] %v1197
    %1267 = vst [vmem:[#allocation2 + $0x1c0] sm:$0xff] %v1040
    %1268 = vst [vmem:[#allocation2 + $0x1c8] sm:$0xff] %v1042
    %1269 = vst [vmem:[#allocation2 + $0x1d0] sm:$0xff] %v1201
    %1270 = vst [vmem:[#allocation2 + $0x1d8] sm:$0xff] %v1203
    %1271 = vst [vmem:[#allocation2 + $0x1e0] sm:$0xff] %v1046
    %1272 = vst [vmem:[#allocation2 + $0x1e8] sm:$0xff] %v1048
    %1273 = vst [vmem:[#allocation2 + $0x1f0] sm:$0xff] %v1207
    %1274 = vst [vmem:[#allocation2 + $0x1f8] sm:$0xff] %v1209
    %v1275 = vld [vmem:[%s7] sm:$0xff]
    %v1276 = vld [vmem:[%s7 + $0x8] sm:$0xff]
    %v1277 = vld [vmem:[%s7 + $0x10] sm:$0xff]
    %v1278 = vld [vmem:[%s7 + $0x18] sm:$0xff]
    %v1279 = vld [vmem:[%s7 + $0x20] sm:$0xff]
    %v1280 = vld [vmem:[%s7 + $0x28] sm:$0xff]
    %v1281 = vld [vmem:[%s7 + $0x30] sm:$0xff]
    %v1282 = vld [vmem:[%s7 + $0x38] sm:$0xff]
    %v1283 = vld [vmem:[%s7 + $0x40] sm:$0xff]
    %v1284 = vld [vmem:[%s7 + $0x48] sm:$0xff]
    %v1285 = vld [vmem:[%s7 + $0x50] sm:$0xff]
    %v1286 = vld [vmem:[%s7 + $0x58] sm:$0xff]
    %v1287 = vld [vmem:[%s7 + $0x60] sm:$0xff]
    %v1288 = vld [vmem:[%s7 + $0x68] sm:$0xff]
    %v1289 = vld [vmem:[%s7 + $0x70] sm:$0xff]
    %v1290 = vld [vmem:[%s7 + $0x78] sm:$0xff]
    %v1291 = vld [vmem:[%s7 + $0x80] sm:$0xff]
    %v1292 = vld [vmem:[%s7 + $0x88] sm:$0xff]
    %v1293 = vld [vmem:[%s7 + $0x90] sm:$0xff]
    %v1294 = vld [vmem:[%s7 + $0x98] sm:$0xff]
    %v1295 = vld [vmem:[%s7 + $0xa0] sm:$0xff]
    %v1296 = vld [vmem:[%s7 + $0xa8] sm:$0xff]
    %v1297 = vld [vmem:[%s7 + $0xb0] sm:$0xff]
    %v1298 = vld [vmem:[%s7 + $0xb8] sm:$0xff]
    %v1299 = vld [vmem:[%s7 + $0xc0] sm:$0xff]
    %v1300 = vld [vmem:[%s7 + $0xc8] sm:$0xff]
    %v1301 = vld [vmem:[%s7 + $0xd0] sm:$0xff]
    %v1302 = vld [vmem:[%s7 + $0xd8] sm:$0xff]
    %v1303 = vld [vmem:[%s7 + $0xe0] sm:$0xff]
    %v1304 = vld [vmem:[%s7 + $0xe8] sm:$0xff]
    %v1305 = vld [vmem:[%s7 + $0xf0] sm:$0xff]
    %v1306 = vld [vmem:[%s7 + $0xf8] sm:$0xff]
    %v1307 = vld [vmem:[%s7 + $0x100] sm:$0xff]
    %v1308 = vld [vmem:[%s7 + $0x108] sm:$0xff]
    %v1309 = vld [vmem:[%s7 + $0x110] sm:$0xff]
    %v1310 = vld [vmem:[%s7 + $0x118] sm:$0xff]
    %v1311 = vld [vmem:[%s7 + $0x120] sm:$0xff]
    %v1312 = vld [vmem:[%s7 + $0x128] sm:$0xff]
    %v1313 = vld [vmem:[%s7 + $0x130] sm:$0xff]
    %v1314 = vld [vmem:[%s7 + $0x138] sm:$0xff]
    %v1315 = vld [vmem:[%s7 + $0x140] sm:$0xff]
    %v1316 = vld [vmem:[%s7 + $0x148] sm:$0xff]
    %v1317 = vld [vmem:[%s7 + $0x150] sm:$0xff]
    %v1318 = vld [vmem:[%s7 + $0x158] sm:$0xff]
    %v1319 = vld [vmem:[%s7 + $0x160] sm:$0xff]
    %v1320 = vld [vmem:[%s7 + $0x168] sm:$0xff]
    %v1321 = vld [vmem:[%s7 + $0x170] sm:$0xff]
    %v1322 = vld [vmem:[%s7 + $0x178] sm:$0xff]
    %v1323 = vld [vmem:[%s7 + $0x180] sm:$0xff]
    %v1324 = vld [vmem:[%s7 + $0x188] sm:$0xff]
    %v1325 = vld [vmem:[%s7 + $0x190] sm:$0xff]
    %v1326 = vld [vmem:[%s7 + $0x198] sm:$0xff]
    %v1327 = vld [vmem:[%s7 + $0x1a0] sm:$0xff]
    %v1328 = vld [vmem:[%s7 + $0x1a8] sm:$0xff]
    %v1329 = vld [vmem:[%s7 + $0x1b0] sm:$0xff]
    %v1330 = vld [vmem:[%s7 + $0x1b8] sm:$0xff]
    %v1331 = vld [vmem:[%s7 + $0x1c0] sm:$0xff]
    %v1332 = vld [vmem:[%s7 + $0x1c8] sm:$0xff]
    %v1333 = vld [vmem:[%s7 + $0x1d0] sm:$0xff]
    %v1334 = vld [vmem:[%s7 + $0x1d8] sm:$0xff]
    %v1335 = vld [vmem:[%s7 + $0x1e0] sm:$0xff]
    %v1336 = vld [vmem:[%s7 + $0x1e8] sm:$0xff]
    %v1337 = vld [vmem:[%s7 + $0x1f0] sm:$0xff]
    %v1338 = vld [vmem:[%s7 + $0x1f8] sm:$0xff]
    %s1339 = scalar_lea.vmem %s1, 8
    %v1340 = vld [vmem:[%s1339] sm:$0xff]
    %s1341 = scalar_lea.vmem %s2, 8
    %v1342 = vld [vmem:[%s1341] sm:$0xff]
    loop: start=0, step=1, limit=16
    $region53: #{char_rnn_forward.1} parent=1 // loop_pre_header
      _
    $region54: #{char_rnn_forward.1} parent=1 // loop_header
      %s1344 = sphi 0, %s1348
      %p1345 = scmp.ge.s32.totalorder %s1344, 16
      %v1349 = vphi %v1340, %v1527
      %v1350 = vphi %v1342, %v1525
    $region55: #{char_rnn_forward.1} parent=1 // loop_header_branch
      %1347 = sbr.rel (%p1345) target = $region59
    $region56: #{char_rnn_forward.1} parent=1 // loop_body
      %s1351 = smul.u32 %s1344, 4
      %s1352 = smul.addr %s1351, 8
      %s1353 = scalar_lea.vmem [#allocation2], %s1352
      %v1354 = vld [vmem:[%s1353] sm:$0xff]
      %v1355 = vld [vmem:[%s1353 + $0x8] sm:$0xff]
      %v1356 = vld [vmem:[%s1353 + $0x10] sm:$0xff]
      %v1357 = vld [vmem:[%s1353 + $0x18] sm:$0xff]
      %1358 = vmatprep.subr.mxu0 %v1336
      %1359 = vmatpush1.msra.mxu0 %v1335
      %1360 = vmatprep.subr.mxu0 %v1332
      %1361 = vmatpush1.msra.mxu0 %v1331
      %1362 = vmatprep.subr.mxu0 %v1328
      %1363 = vmatpush1.msra.mxu0 %v1327
      %1364 = vmatprep.subr.mxu0 %v1324
      %1365 = vmatpush1.msra.mxu0 %v1323
      %1366 = vmatprep.subr.mxu0 %v1320
      %1367 = vmatpush1.msra.mxu0 %v1319
      %1368 = vmatprep.subr.mxu0 %v1316
      %1369 = vmatpush1.msra.mxu0 %v1315
      %1370 = vmatprep.subr.mxu0 %v1312
      %1371 = vmatpush1.msra.mxu0 %v1311
      %1372 = vmatprep.subr.mxu0 %v1308
      %1373 = vmatpush1.msra.mxu0 %v1307
      %1374 = vmatprep.subr.mxu0 %v1304
      %1375 = vmatpush1.msra.mxu0 %v1303
      %1376 = vmatprep.subr.mxu0 %v1300
      %1377 = vmatpush1.msra.mxu0 %v1299
      %1378 = vmatprep.subr.mxu0 %v1296
      %1379 = vmatpush1.msra.mxu0 %v1295
      %1380 = vmatprep.subr.mxu0 %v1292
      %1381 = vmatpush1.msra.mxu0 %v1291
      %1382 = vmatprep.subr.mxu0 %v1288
      %1383 = vmatpush1.msra.mxu0 %v1287
      %1384 = vmatprep.subr.mxu0 %v1284
      %1385 = vmatpush1.msra.mxu0 %v1283
      %1386 = vmatprep.subr.mxu0 %v1280
      %1387 = vmatpush1.msra.mxu0 %v1279
      %1388 = vmatprep.subr.mxu0 %v1276
      %1389 = vmatpush1.msra.mxu0 %v1275
      %1390 = vmatprep.subr.mxu0 0.0
      %1391 = vmatpush2.msra.mxu0 0.0
      %1392 = vmatprep.subr.mxu0 0.0
      %1393 = vmatpush2.msra.mxu0 0.0
      %1394 = vmatprep.subr.mxu0 0.0
      %1395 = vmatpush2.msra.mxu0 0.0
      %1396 = vmatprep.subr.mxu0 0.0
      %1397 = vmatpush2.msra.mxu0 0.0
      %1398 = vmatprep.subr.mxu0 0.0
      %1399 = vmatpush2.msra.mxu0 0.0
      %1400 = vmatprep.subr.mxu0 0.0
      %1401 = vmatpush2.msra.mxu0 0.0
      %1402 = vmatprep.subr.mxu0 0.0
      %1403 = vmatpush2.msra.mxu0 0.0
      %1404 = vmatprep.subr.mxu0 0.0
      %1405 = vmatpush2.msra.mxu0 0.0
      %1406 = vmatprep.subr.mxu0 0.0
      %1407 = vmatpush2.msra.mxu0 0.0
      %1408 = vmatprep.subr.mxu0 0.0
      %1409 = vmatpush2.msra.mxu0 0.0
      %1410 = vmatprep.subr.mxu0 0.0
      %1411 = vmatpush2.msra.mxu0 0.0
      %1412 = vmatprep.subr.mxu0 0.0
      %1413 = vmatpush2.msra.mxu0 0.0
      %1414 = vmatprep.subr.mxu0 0.0
      %1415 = vmatpush2.msra.mxu0 0.0
      %1416 = vmatprep.subr.mxu0 0.0
      %1417 = vmatpush2.msra.mxu0 0.0
      %1418 = vmatprep.subr.mxu0 0.0
      %1419 = vmatpush2.msra.mxu0 0.0
      %1420 = vmatprep.subr.mxu0 0.0
      %1421 = vmatpush2.msra.mxu0 0.0
      %1422 = vmatprep.mubr.f32.mxu0 0.0
      %1423 = vmatmul.mubr.f32.gmra.mxu0 %v1349
      %v1424 = vpop.f32.mrf.mxu0
      %v1425 = vadd.f32 0.0, %v1424
      %v1426 = vpop.f32.mrf.mxu0
      %v1427 = vadd.f32 0.0, %v1426
      %1428 = vdwg.mxu0
      %1429 = vmatprep.subr.mxu0 %v1338
      %1430 = vmatpush1.msra.mxu0 %v1337
      %1431 = vmatprep.subr.mxu0 %v1334
      %1432 = vmatpush1.msra.mxu0 %v1333
      %1433 = vmatprep.subr.mxu0 %v1330
      %1434 = vmatpush1.msra.mxu0 %v1329
      %1435 = vmatprep.subr.mxu0 %v1326
      %1436 = vmatpush1.msra.mxu0 %v1325
      %1437 = vmatprep.subr.mxu0 %v1322
      %1438 = vmatpush1.msra.mxu0 %v1321
      %1439 = vmatprep.subr.mxu0 %v1318
      %1440 = vmatpush1.msra.mxu0 %v1317
      %1441 = vmatprep.subr.mxu0 %v1314
      %1442 = vmatpush1.msra.mxu0 %v1313
      %1443 = vmatprep.subr.mxu0 %v1310
      %1444 = vmatpush1.msra.mxu0 %v1309
      %1445 = vmatprep.subr.mxu0 %v1306
      %1446 = vmatpush1.msra.mxu0 %v1305
      %1447 = vmatprep.subr.mxu0 %v1302
      %1448 = vmatpush1.msra.mxu0 %v1301
      %1449 = vmatprep.subr.mxu0 %v1298
      %1450 = vmatpush1.msra.mxu0 %v1297
      %1451 = vmatprep.subr.mxu0 %v1294
      %1452 = vmatpush1.msra.mxu0 %v1293
      %1453 = vmatprep.subr.mxu0 %v1290
      %1454 = vmatpush1.msra.mxu0 %v1289
      %1455 = vmatprep.subr.mxu0 %v1286
      %1456 = vmatpush1.msra.mxu0 %v1285
      %1457 = vmatprep.subr.mxu0 %v1282
      %1458 = vmatpush1.msra.mxu0 %v1281
      %1459 = vmatprep.subr.mxu0 %v1278
      %1460 = vmatpush1.msra.mxu0 %v1277
      %1461 = vmatprep.subr.mxu0 0.0
      %1462 = vmatpush2.msra.mxu0 0.0
      %1463 = vmatprep.subr.mxu0 0.0
      %1464 = vmatpush2.msra.mxu0 0.0
      %1465 = vmatprep.subr.mxu0 0.0
      %1466 = vmatpush2.msra.mxu0 0.0
      %1467 = vmatprep.subr.mxu0 0.0
      %1468 = vmatpush2.msra.mxu0 0.0
      %1469 = vmatprep.subr.mxu0 0.0
      %1470 = vmatpush2.msra.mxu0 0.0
      %1471 = vmatprep.subr.mxu0 0.0
      %1472 = vmatpush2.msra.mxu0 0.0
      %1473 = vmatprep.subr.mxu0 0.0
      %1474 = vmatpush2.msra.mxu0 0.0
      %1475 = vmatprep.subr.mxu0 0.0
      %1476 = vmatpush2.msra.mxu0 0.0
      %1477 = vmatprep.subr.mxu0 0.0
      %1478 = vmatpush2.msra.mxu0 0.0
      %1479 = vmatprep.subr.mxu0 0.0
      %1480 = vmatpush2.msra.mxu0 0.0
      %1481 = vmatprep.subr.mxu0 0.0
      %1482 = vmatpush2.msra.mxu0 0.0
      %1483 = vmatprep.subr.mxu0 0.0
      %1484 = vmatpush2.msra.mxu0 0.0
      %1485 = vmatprep.subr.mxu0 0.0
      %1486 = vmatpush2.msra.mxu0 0.0
      %1487 = vmatprep.subr.mxu0 0.0
      %1488 = vmatpush2.msra.mxu0 0.0
      %1489 = vmatprep.subr.mxu0 0.0
      %1490 = vmatpush2.msra.mxu0 0.0
      %1491 = vmatprep.subr.mxu0 0.0
      %1492 = vmatpush2.msra.mxu0 0.0
      %1493 = vmatprep.mubr.f32.mxu0 0.0
      %1494 = vmatmul.mubr.f32.gmra.mxu0 %v1349
      %v1495 = vpop.f32.mrf.mxu0
      %v1496 = vadd.f32 0.0, %v1495
      %v1497 = vpop.f32.mrf.mxu0
      %v1498 = vadd.f32 0.0, %v1497
      %1499 = vdwg.mxu0
      %v1500 = vadd.f32 %v1354, %v1425
      %v1501 = vadd.f32 %v1355, %v1427
      %v1502 = vadd.f32 %v1356, %v1496
      %v1503 = vadd.f32 %v1357, %v1498
      %v1504 = vxor.u32 %v1500, 2147483648
      %v1505 = vmul.f32 %v1504, 1.442695
      %v1506 = vpow.pop %v1505
      %v1507 = vadd.f32 %v1506, 1.0
      %v1508 = vrcp.pop %v1507
      %v1509 = vmul.f32 1.0, %v1508
      %v1510 = vxor.u32 %v1501, 2147483648
      %v1511 = vmul.f32 %v1510, 1.442695
      %v1512 = vpow.pop %v1511
      %v1513 = vadd.f32 %v1512, 1.0
      %v1514 = vrcp.pop %v1513
      %v1515 = vmul.f32 1.0, %v1514
      %v1516 = vtanh.pop %v1502
      %v1517 = vxor.u32 %v1503, 2147483648
      %v1518 = vmul.f32 %v1517, 1.442695
      %v1519 = vpow.pop %v1518
      %v1520 = vadd.f32 %v1519, 1.0
      %v1521 = vrcp.pop %v1520
      %v1522 = vmul.f32 1.0, %v1521
      %v1523 = vmul.f32 %v1515, %v1350
      %v1524 = vmul.f32 %v1509, %v1516
      %v1525 = vadd.f32 %v1523, %v1524
      %v1526 = vtanh.pop %v1525
      %v1527 = vmul.f32 %v1522, %v1526
      %s1528 = smul.u32 %s1344, 8
      %s1529 = scalar_lea.vmem [#allocation3], %s1528
      %1530 = vst [vmem:[%s1529] sm:$0xff] %v1527
    $region57: #{char_rnn_forward.1} parent=1 // loop_footer
      %s1348 = sadd.s32 1, %s1344
    $region58: #{char_rnn_forward.1} parent=1 // loop_footer_branch
      %1343 = sbr.rel target = $region54
    $region59: #{char_rnn_forward.1} parent=1 // loop_exit
      _
    %s1531 = scalar_lea.vmem [#allocation4], 8
    %1532 = vst [vmem:[%s1531] sm:$0xff] %v1349
    %s1533 = scalar_lea.vmem [#allocation6], 8
    %1534 = vst [vmem:[%s1533] sm:$0xff] %v1350
    %v1535 = vld [vmem:[#allocation3] sm:$0xff]
    %v1536 = vld [vmem:[#allocation3 + $0x8] sm:$0xff]
    %v1537 = vld [vmem:[#allocation3 + $0x10] sm:$0xff]
    %v1538 = vld [vmem:[#allocation3 + $0x18] sm:$0xff]
    %v1539 = vld [vmem:[#allocation3 + $0x20] sm:$0xff]
    %v1540 = vld [vmem:[#allocation3 + $0x28] sm:$0xff]
    %v1541 = vld [vmem:[#allocation3 + $0x30] sm:$0xff]
    %v1542 = vld [vmem:[#allocation3 + $0x38] sm:$0xff]
    %v1543 = vld [vmem:[#allocation3 + $0x40] sm:$0xff]
    %v1544 = vld [vmem:[#allocation3 + $0x48] sm:$0xff]
    %v1545 = vld [vmem:[#allocation3 + $0x50] sm:$0xff]
    %v1546 = vld [vmem:[#allocation3 + $0x58] sm:$0xff]
    %v1547 = vld [vmem:[#allocation3 + $0x60] sm:$0xff]
    %v1548 = vld [vmem:[#allocation3 + $0x68] sm:$0xff]
    %v1549 = vld [vmem:[#allocation3 + $0x70] sm:$0xff]
    %v1550 = vld [vmem:[#allocation3 + $0x78] sm:$0xff]
    %v1551 = vld [vmem:[%s9] sm:$0xff]
    %v1552 = vld [vmem:[%s9 + $0x8] sm:$0xff]
    %v1553 = vld [vmem:[%s9 + $0x10] sm:$0xff]
    %v1554 = vld [vmem:[%s9 + $0x18] sm:$0xff]
    %v1555 = vld [vmem:[%s9 + $0x20] sm:$0xff]
    %v1556 = vld [vmem:[%s9 + $0x28] sm:$0xff]
    %v1557 = vld [vmem:[%s9 + $0x30] sm:$0xff]
    %v1558 = vld [vmem:[%s9 + $0x38] sm:$0xff]
    %v1559 = vld [vmem:[%s9 + $0x40] sm:$0xff]
    %v1560 = vld [vmem:[%s9 + $0x48] sm:$0xff]
    %v1561 = vld [vmem:[%s9 + $0x50] sm:$0xff]
    %v1562 = vld [vmem:[%s9 + $0x58] sm:$0xff]
    %v1563 = vld [vmem:[%s9 + $0x60] sm:$0xff]
    %v1564 = vld [vmem:[%s9 + $0x68] sm:$0xff]
    %v1565 = vld [vmem:[%s9 + $0x70] sm:$0xff]
    %v1566 = vld [vmem:[%s9 + $0x78] sm:$0xff]
    %v1567 = vld [vmem:[%s10] sm:$0x1]
    %v1569 = vlaneseq
    %v1570 = vshrl.u32 %v1569, 7
    %v1571 = vsub.s32 0, %v1570
    %v1572 = vrot.slane %v1567, %v1571
    %1574 = vmatprep.subr.mxu0 0.0
    %1575 = vmatpush1.msra.mxu0 %v1566
    %1576 = vmatprep.subr.mxu0 0.0
    %1577 = vmatpush1.msra.mxu0 %v1565
    %1578 = vmatprep.subr.mxu0 0.0
    %1579 = vmatpush1.msra.mxu0 %v1564
    %1580 = vmatprep.subr.mxu0 0.0
    %1581 = vmatpush1.msra.mxu0 %v1563
    %1582 = vmatprep.subr.mxu0 0.0
    %1583 = vmatpush1.msra.mxu0 %v1562
    %1584 = vmatprep.subr.mxu0 0.0
    %1585 = vmatpush1.msra.mxu0 %v1561
    %1586 = vmatprep.subr.mxu0 0.0
    %1587 = vmatpush1.msra.mxu0 %v1560
    %1588 = vmatprep.subr.mxu0 0.0
    %1589 = vmatpush1.msra.mxu0 %v1559
    %1590 = vmatprep.subr.mxu0 0.0
    %1591 = vmatpush1.msra.mxu0 %v1558
    %1592 = vmatprep.subr.mxu0 0.0
    %1593 = vmatpush1.msra.mxu0 %v1557
    %1594 = vmatprep.subr.mxu0 0.0
    %1595 = vmatpush1.msra.mxu0 %v1556
    %1596 = vmatprep.subr.mxu0 0.0
    %1597 = vmatpush1.msra.mxu0 %v1555
    %1598 = vmatprep.subr.mxu0 0.0
    %1599 = vmatpush1.msra.mxu0 %v1554
    %1600 = vmatprep.subr.mxu0 0.0
    %1601 = vmatpush1.msra.mxu0 %v1553
    %1602 = vmatprep.subr.mxu0 0.0
    %1603 = vmatpush1.msra.mxu0 %v1552
    %1604 = vmatprep.subr.mxu0 0.0
    %1605 = vmatpush1.msra.mxu0 %v1551
    %1606 = vmatprep.subr.mxu0 0.0
    %1607 = vmatpush2.msra.mxu0 0.0
    %1608 = vmatprep.subr.mxu0 0.0
    %1609 = vmatpush2.msra.mxu0 0.0
    %1610 = vmatprep.subr.mxu0 0.0
    %1611 = vmatpush2.msra.mxu0 0.0
    %1612 = vmatprep.subr.mxu0 0.0
    %1613 = vmatpush2.msra.mxu0 0.0
    %1614 = vmatprep.subr.mxu0 0.0
    %1615 = vmatpush2.msra.mxu0 0.0
    %1616 = vmatprep.subr.mxu0 0.0
    %1617 = vmatpush2.msra.mxu0 0.0
    %1618 = vmatprep.subr.mxu0 0.0
    %1619 = vmatpush2.msra.mxu0 0.0
    %1620 = vmatprep.subr.mxu0 0.0
    %1621 = vmatpush2.msra.mxu0 0.0
    %1622 = vmatprep.subr.mxu0 0.0
    %1623 = vmatpush2.msra.mxu0 0.0
    %1624 = vmatprep.subr.mxu0 0.0
    %1625 = vmatpush2.msra.mxu0 0.0
    %1626 = vmatprep.subr.mxu0 0.0
    %1627 = vmatpush2.msra.mxu0 0.0
    %1628 = vmatprep.subr.mxu0 0.0
    %1629 = vmatpush2.msra.mxu0 0.0
    %1630 = vmatprep.subr.mxu0 0.0
    %1631 = vmatpush2.msra.mxu0 0.0
    %1632 = vmatprep.subr.mxu0 0.0
    %1633 = vmatpush2.msra.mxu0 0.0
    %1634 = vmatprep.subr.mxu0 0.0
    %1635 = vmatpush2.msra.mxu0 0.0
    %1636 = vmatprep.subr.mxu0 0.0
    %1637 = vmatpush2.msra.mxu0 0.0
    %1638 = vmatprep.mubr.f32.mxu0 0.0
    %1639 = vmatmul.mubr.f32.gmra.mxu0 %v1535
    %v1640 = vpop.f32.mrf.mxu0
    %v1641 = vadd.f32 %v1572, %v1640
    %v1642 = vpop.f32.mrf.mxu0
    %1643 = vmatprep.mubr.f32.mxu0 0.0
    %1644 = vmatmul.mubr.f32.gmra.mxu0 %v1536
    %v1645 = vpop.f32.mrf.mxu0
    %v1646 = vadd.f32 %v1572, %v1645
    %v1647 = vpop.f32.mrf.mxu0
    %1648 = vmatprep.mubr.f32.mxu0 0.0
    %1649 = vmatmul.mubr.f32.gmra.mxu0 %v1537
    %v1650 = vpop.f32.mrf.mxu0
    %v1651 = vadd.f32 %v1572, %v1650
    %v1652 = vpop.f32.mrf.mxu0
    %1653 = vmatprep.mubr.f32.mxu0 0.0
    %1654 = vmatmul.mubr.f32.gmra.mxu0 %v1538
    %v1655 = vpop.f32.mrf.mxu0
    %v1656 = vadd.f32 %v1572, %v1655
    %v1657 = vpop.f32.mrf.mxu0
    %1658 = vmatprep.mubr.f32.mxu0 0.0
    %1659 = vmatmul.mubr.f32.gmra.mxu0 %v1539
    %v1660 = vpop.f32.mrf.mxu0
    %v1661 = vadd.f32 %v1572, %v1660
    %v1662 = vpop.f32.mrf.mxu0
    %1663 = vmatprep.mubr.f32.mxu0 0.0
    %1664 = vmatmul.mubr.f32.gmra.mxu0 %v1540
    %v1665 = vpop.f32.mrf.mxu0
    %v1666 = vadd.f32 %v1572, %v1665
    %v1667 = vpop.f32.mrf.mxu0
    %1668 = vmatprep.mubr.f32.mxu0 0.0
    %1669 = vmatmul.mubr.f32.gmra.mxu0 %v1541
    %v1670 = vpop.f32.mrf.mxu0
    %v1671 = vadd.f32 %v1572, %v1670
    %v1672 = vpop.f32.mrf.mxu0
    %1673 = vmatprep.mubr.f32.mxu0 0.0
    %1674 = vmatmul.mubr.f32.gmra.mxu0 %v1542
    %v1675 = vpop.f32.mrf.mxu0
    %v1676 = vadd.f32 %v1572, %v1675
    %v1677 = vpop.f32.mrf.mxu0
    %1678 = vmatprep.mubr.f32.mxu0 0.0
    %1679 = vmatmul.mubr.f32.gmra.mxu0 %v1543
    %v1680 = vpop.f32.mrf.mxu0
    %v1681 = vadd.f32 %v1572, %v1680
    %v1682 = vpop.f32.mrf.mxu0
    %1683 = vmatprep.mubr.f32.mxu0 0.0
    %1684 = vmatmul.mubr.f32.gmra.mxu0 %v1544
    %v1685 = vpop.f32.mrf.mxu0
    %v1686 = vadd.f32 %v1572, %v1685
    %v1687 = vpop.f32.mrf.mxu0
    %1688 = vmatprep.mubr.f32.mxu0 0.0
    %1689 = vmatmul.mubr.f32.gmra.mxu0 %v1545
    %v1690 = vpop.f32.mrf.mxu0
    %v1691 = vadd.f32 %v1572, %v1690
    %v1692 = vpop.f32.mrf.mxu0
    %1693 = vmatprep.mubr.f32.mxu0 0.0
    %1694 = vmatmul.mubr.f32.gmra.mxu0 %v1546
    %v1695 = vpop.f32.mrf.mxu0
    %v1696 = vadd.f32 %v1572, %v1695
    %v1697 = vpop.f32.mrf.mxu0
    %1698 = vmatprep.mubr.f32.mxu0 0.0
    %1699 = vmatmul.mubr.f32.gmra.mxu0 %v1547
    %v1700 = vpop.f32.mrf.mxu0
    %v1701 = vadd.f32 %v1572, %v1700
    %v1702 = vpop.f32.mrf.mxu0
    %1703 = vmatprep.mubr.f32.mxu0 0.0
    %1704 = vmatmul.mubr.f32.gmra.mxu0 %v1548
    %v1705 = vpop.f32.mrf.mxu0
    %v1706 = vadd.f32 %v1572, %v1705
    %v1707 = vpop.f32.mrf.mxu0
    %1708 = vmatprep.mubr.f32.mxu0 0.0
    %1709 = vmatmul.mubr.f32.gmra.mxu0 %v1549
    %v1710 = vpop.f32.mrf.mxu0
    %v1711 = vadd.f32 %v1572, %v1710
    %v1712 = vpop.f32.mrf.mxu0
    %1713 = vmatprep.mubr.f32.mxu0 0.0
    %1714 = vmatmul.mubr.f32.gmra.mxu0 %v1550
    %v1715 = vpop.f32.mrf.mxu0
    %v1716 = vadd.f32 %v1572, %v1715
    %v1717 = vpop.f32.mrf.mxu0
    %1718 = vdwg.mxu0
    %1719 = vst [vmem:[%s11] sm:$0xff] %v1641
    %1720 = vst [vmem:[%s11 + $0x8] sm:$0xff] %v1646
    %1721 = vst [vmem:[%s11 + $0x10] sm:$0xff] %v1651
    %1722 = vst [vmem:[%s11 + $0x18] sm:$0xff] %v1656
    %1723 = vst [vmem:[%s11 + $0x20] sm:$0xff] %v1661
    %1724 = vst [vmem:[%s11 + $0x28] sm:$0xff] %v1666
    %1725 = vst [vmem:[%s11 + $0x30] sm:$0xff] %v1671
    %1726 = vst [vmem:[%s11 + $0x38] sm:$0xff] %v1676
    %1727 = vst [vmem:[%s11 + $0x40] sm:$0xff] %v1681
    %1728 = vst [vmem:[%s11 + $0x48] sm:$0xff] %v1686
    %1729 = vst [vmem:[%s11 + $0x50] sm:$0xff] %v1691
    %1730 = vst [vmem:[%s11 + $0x58] sm:$0xff] %v1696
    %1731 = vst [vmem:[%s11 + $0x60] sm:$0xff] %v1701
    %1732 = vst [vmem:[%s11 + $0x68] sm:$0xff] %v1706
    %1733 = vst [vmem:[%s11 + $0x70] sm:$0xff] %v1711
    %1734 = vst [vmem:[%s11 + $0x78] sm:$0xff] %v1716
    // Predicated region
    $region60: #{char_rnn_forward.1} parent=1 // pred_check
      _
    $region61: #{char_rnn_forward.1} parent=1 // pred_check_branch
      %1736 = sbr.rel (0) target = $region63
    $region62: #{char_rnn_forward.1} parent=1 // pred_region
      _
    $region63: #{char_rnn_forward.1} parent=1 // pred_fallthru
      _
    // Predicated region
    $region64: #{char_rnn_forward.1} parent=1 // pred_check
      _
    $region65: #{char_rnn_forward.1} parent=1 // pred_check_branch
      %1738 = sbr.rel (0) target = $region67
    $region66: #{char_rnn_forward.1} parent=1 // pred_region
      %s1740 = ssub.s32 256, 256
      %1741 = vsyncadd [#allocation5], %s1740
      %s1742 = sshll.u32 [#allocation4], 4
      %s1743 = int_to_ptr.vmem [resolvable:$true] %s1742
      %1748 = dma.vmem_to_hbm [thread:$0]  %s1743, 256, %s12, [#allocation5], 128, 128, 8
    $region67: #{char_rnn_forward.1} parent=1 // pred_fallthru
      _
    // Predicated region
    $region68: #{char_rnn_forward.1} parent=1 // pred_check
      _
    $region69: #{char_rnn_forward.1} parent=1 // pred_check_branch
      %1750 = sbr.rel (0) target = $region71
    $region70: #{char_rnn_forward.1} parent=1 // pred_region
      %s1752 = ssub.s32 256, 256
      %1753 = vsyncadd [#allocation7], %s1752
      %s1754 = sshll.u32 [#allocation6], 4
      %s1755 = int_to_ptr.vmem [resolvable:$true] %s1754
      %1760 = dma.vmem_to_hbm [thread:$0]  %s1755, 256, %s13, [#allocation7], 128, 128, 8
    $region71: #{char_rnn_forward.1} parent=1 // pred_fallthru
      _
    // Predicated region
    $region72: #{char_rnn_forward.1} parent=1 // pred_check
      _
    $region73: #{char_rnn_forward.1} parent=1 // pred_check_branch
      %1762 = sbr.rel (0) target = $region75
    $region74: #{char_rnn_forward.1} parent=1 // pred_region
      _
    $region75: #{char_rnn_forward.1} parent=1 // pred_fallthru
      _
    // Predicated region
    $region76: #{char_rnn_forward.1} parent=1 // pred_check
      _
    $region77: #{char_rnn_forward.1} parent=1 // pred_check_branch
      %1764 = sbr.rel (0) target = $region79
    $region78: #{char_rnn_forward.1} parent=1 // pred_region
      %1765 = dma.done [#allocation5], 256
    $region79: #{char_rnn_forward.1} parent=1 // pred_fallthru
      _
    // Predicated region
    $region80: #{char_rnn_forward.1} parent=1 // pred_check
      _
    $region81: #{char_rnn_forward.1} parent=1 // pred_check_branch
      %1767 = sbr.rel (0) target = $region83
    $region82: #{char_rnn_forward.1} parent=1 // pred_region
      %1768 = dma.done [#allocation7], 256
    $region83: #{char_rnn_forward.1} parent=1 // pred_fallthru
      _
    %1769 = vsyncpa [#allocation5], 1
    %1770 = vsyncpa [#allocation7], 1

</llo_original>
